<compile_context>
chip_gen: v7x
topology: tpu7x:2x2x1
jax: 0.10.0
libtpu: 0.0.40
codegen_flags: <defaults>
</compile_context>

<pallas_src>
import functools
import math

import jax
import jax.numpy as jnp
from jax.experimental import pallas as pl
from jax.experimental.pallas import tpu as pltpu


# ------------------------------- kernels ------------------------------------


def _layernorm_rows_kernel(x_ref, a_ref, b_ref, o_ref, *, eps, hidden):
    """Plain row-tiled LayerNorm: x_ref (tile_rows, hidden), a/b (1, hidden)."""
    x = x_ref[...].astype(jnp.float32)
    mean = jnp.mean(x, axis=-1, keepdims=True)
    # torch.std default = unbiased (N-1); eps is added to std, not var.
    # Two-pass reduction (subtract mean, then square) for numerics, but the
    # (x - mean) value is NOT held live across to the output expression.
    var = jnp.sum(jnp.square(x - mean), axis=-1, keepdims=True) / jnp.float32(
        max(hidden - 1, 1))
    # Exact per-row reciprocal: operates on a (tile_rows, 1) column so its cost
    # is noise on this memory-bound kernel, and parity stays tight.
    inv = 1.0 / (jnp.sqrt(var) + jnp.float32(eps))
    a = a_ref[...].astype(jnp.float32)
    b = b_ref[...].astype(jnp.float32)
    # TODO(synk): on v6e/v7x a bf16 final scale/shift (stats kept in f32) would
    # shave a bit more VMEM/VALU for bf16 inputs; kept f32 for exact parity.
    o_ref[...] = ((x - mean) * inv * a + b).astype(o_ref.dtype)


def _layernorm_packed_kernel(x_ref, a_ref, b_ref, s_ref, st_ref, o_ref, *,
                             eps, hidden):
    """Lane-dense packed LayerNorm.

    P rows packed into each super-row of width P*hidden (a multiple of 128):
      x_ref  : (tile, P*hidden)
      a/b    : (1, P*hidden)   (params tiled P times in the wrapper)
      s_ref  : (P*hidden, P)   one-hot segment membership (f32)
      st_ref : (P, P*hidden)   its transpose (broadcast-back)
    The segment matmuls run on the otherwise idle MXU.
    """
    x = x_ref[...].astype(jnp.float32)                      # (T, P*H)
    s = s_ref[...]
    st = st_ref[...]
    hp = jax.lax.Precision.HIGHEST                          # keep f32 accuracy
    sums = jnp.dot(x, s, preferred_element_type=jnp.float32, precision=hp)
    mean = sums / jnp.float32(hidden)                       # (T, P)
    mean_b = jnp.dot(mean, st, preferred_element_type=jnp.float32,
                     precision=hp)                          # (T, P*H)
    var = jnp.dot(jnp.square(x - mean_b), s,
                  preferred_element_type=jnp.float32,
                  precision=hp) / jnp.float32(max(hidden - 1, 1))   # (T, P)
    inv = 1.0 / (jnp.sqrt(var) + jnp.float32(eps))          # (T, P)
    inv_b = jnp.dot(inv, st, preferred_element_type=jnp.float32,
                    precision=hp)                           # (T, P*H)
    a = a_ref[...].astype(jnp.float32)
    b = b_ref[...].astype(jnp.float32)
    o_ref[...] = ((x - mean_b) * inv_b * a + b).astype(o_ref.dtype)


# --------------------------- tuning heuristics -------------------------------


def _tpu_generation_params():
    """Return (pipeline budget bytes, vmem_limit_bytes, multi_core) per chip."""
    vmem = None
    try:
        vmem = int(pltpu.get_tpu_info().vmem_capacity_bytes)
    except Exception:
        vmem = None
    if not vmem or vmem <= 0:
        vmem = 64 * 1024 * 1024            # conservative: v7x per-TC size
    # v7x: 64 MiB per TensorCore, 2 TCs/chip; v5e/v6e: 128 MiB, single TC.
    multi_core = vmem < 96 * 1024 * 1024
    budget = min(int(vmem * 0.45), 80 * 1024 * 1024)   # pipeline buffers
    limit = min(int(vmem * 0.80), 112 * 1024 * 1024)   # scoped VMEM ceiling
    return budget, limit, multi_core


def _pick_tile_rows(rows, lanes, itemsize, budget, multi_core):
    """Largest row tile whose double-buffered blocks + temporaries fit budget."""
    sub = max(8, 32 // itemsize)           # sublane packing granule for dtype
    if rows <= sub:
        return rows                        # single block == full row extent
    # Per-row VMEM: 2x input + 2x output pipeline buffers at the input dtype,
    # plus ~2 full-width f32 values live inside the body (intermediates were
    # trimmed vs the previous version -> larger tiles in the same budget).
    per_row_bytes = lanes * (4 * itemsize + 8)
    tile = max(sub, (budget // per_row_bytes) // sub * sub)
    tile = min(tile, ((rows + sub - 1) // sub) * sub)   # block-bytes cap only
    if multi_core:
        # v7x: give both TensorCores work and prefer an even grid-step count;
        # single-core v5e/v6e keep the largest block instead.
        steps = pl.cdiv(rows, tile)
        if steps == 1:
            cand = max(sub, ((pl.cdiv(rows, 2) + sub - 1) // sub) * sub)
            if pl.cdiv(rows, cand) == 2:
                tile = cand
        elif steps % 2 == 1:
            cand = max(sub, ((pl.cdiv(rows, steps + 1) + sub - 1) // sub) * sub)
            if pl.cdiv(rows, cand) % 2 == 0:
                tile = cand
    return tile


def _pick_row_packing(rows, hidden):
    """Rows packed per lane-dense super-row (1 = no packing)."""
    if hidden % 128 == 0:
        return 1                                   # already lane-dense
    pack = 128 // math.gcd(hidden, 128)            # smallest P: P*hidden % 128 == 0
    if pack <= 1 or rows % pack != 0 or pack * hidden > 4096:
        return 1                                   # fall back to masked stores
    return pack


# -------------------------------- wrapper ------------------------------------


def layer_norm(x, a_2, b_2, eps=1e-6, tile_rows=None):
    """a_2 * (x - mean) / (std + eps) + b_2 over the last axis (torch parity)."""
    orig_shape = x.shape
    hidden = int(orig_shape[-1])
    rows = 1
    for d in orig_shape[:-1]:
        rows *= int(d)

    itemsize = jnp.dtype(x.dtype).itemsize
    budget, vmem_limit, multi_core = _tpu_generation_params()
    compiler_params = pltpu.CompilerParams(
        dimension_semantics=("parallel",),
        vmem_limit_bytes=vmem_limit,
    )

    a1 = jnp.asarray(a_2).reshape(-1)
    b1 = jnp.asarray(b_2).reshape(-1)

    pack = _pick_row_packing(rows, hidden)
    if pack > 1:
        # --- lane-dense packed path (hidden not a multiple of 128) ----------
        lanes = pack * hidden
        rows_p = rows // pack
        x2 = x.reshape(rows_p, lanes)              # free: contiguous reshape
        a2 = jnp.tile(a1, pack).reshape(1, lanes)
        b2 = jnp.tile(b1, pack).reshape(1, lanes)
        seg_id = jnp.arange(lanes, dtype=jnp.int32) // hidden
        seg = (seg_id[:, None] ==
               jnp.arange(pack, dtype=jnp.int32)[None, :]).astype(jnp.float32)
        seg_t = jnp.transpose(seg)                 # (pack, lanes)

        tr = tile_rows if tile_rows is not None else _pick_tile_rows(
            rows_p, lanes, itemsize, budget, multi_core)
        grid = (pl.cdiv(rows_p, tr),)
        kernel = functools.partial(_layernorm_packed_kernel, eps=eps,
                                   hidden=hidden)
        out = pl.pallas_call(
            kernel,
            out_shape=jax.ShapeDtypeStruct((rows_p, lanes), x.dtype),
            grid_spec=pltpu.PrefetchScalarGridSpec(
                num_scalar_prefetch=0,
                grid=grid,
                in_specs=[
                    pl.BlockSpec((tr, lanes), lambda i: (i, 0)),
                    pl.BlockSpec((1, lanes), lambda i: (0, 0)),
                    pl.BlockSpec((1, lanes), lambda i: (0, 0)),
                    pl.BlockSpec((lanes, pack), lambda i: (0, 0)),
                    pl.BlockSpec((pack, lanes), lambda i: (0, 0)),
                ],
                out_specs=pl.BlockSpec((tr, lanes), lambda i: (i, 0)),
            ),
            compiler_params=compiler_params,
        )(x2, a2, b2, seg, seg_t)
        return out.reshape(orig_shape)

    # --- plain row-tiled path (hidden % 128 == 0, or packing not possible) ---
    x2 = x.reshape(rows, hidden)
    a2 = a1.reshape(1, hidden)
    b2 = b1.reshape(1, hidden)
    tr = tile_rows if tile_rows is not None else _pick_tile_rows(
        rows, hidden, itemsize, budget, multi_core)
    grid = (pl.cdiv(rows, tr),)
    kernel = functools.partial(_layernorm_rows_kernel, eps=eps, hidden=hidden)
    # Note: a partial last block computes stats on masked/garbage rows; the
    # masked store keeps outputs correct (only NaN-trap tooling could notice).
    # TODO(synk): fuse adjacent elementwise ops (residual add, dropout, cast)
    # into this kernel at the model level; LayerNorm is HBM-bound, so that is
    # the only remaining way to move wall clock materially.
    out = pl.pallas_call(
        kernel,
        out_shape=jax.ShapeDtypeStruct((rows, hidden), x.dtype),
        grid_spec=pltpu.PrefetchScalarGridSpec(
            num_scalar_prefetch=0,
            grid=grid,
            in_specs=[
                pl.BlockSpec((tr, hidden), lambda i: (i, 0)),
                pl.BlockSpec((1, hidden), lambda i: (0, 0)),
                pl.BlockSpec((1, hidden), lambda i: (0, 0)),
            ],
            out_specs=pl.BlockSpec((tr, hidden), lambda i: (i, 0)),
        ),
        compiler_params=compiler_params,
    )(x2, a2, b2)
    return out.reshape(orig_shape)


# --------------------------------- test --------------------------------------


if __name__ == "__main__":
    eps = 1e-6
    key = jax.random.PRNGKey(0)
    k1, k2 = jax.random.split(key)

    def reference(x, a, b):
        mean = jnp.mean(x, axis=-1, keepdims=True)
        std = jnp.std(x, axis=-1, keepdims=True, ddof=1)   # torch.std (N-1)
        return a * (x - mean) / (std + eps) + b

    # Case 1: hidden=32 (< 128) exercises the lane-dense packed path.
    batch, seq, hidden = 2, 8, 32
    x = jax.random.normal(k1, (batch, seq, hidden), dtype=jnp.float32)
    a_2 = (1.0 + 0.05 * jnp.arange(hidden, dtype=jnp.float32))
    b_2 = (0.01 * jnp.arange(hidden, dtype=jnp.float32))
    out = jax.block_until_ready(layer_norm(x, a_2, b_2, eps=eps))
    ref = reference(x, a_2, b_2)
    assert out.shape == x.shape and out.dtype == x.dtype
    assert jnp.allclose(out, ref, atol=1e-4, rtol=1e-4), "packed path mismatch"

    # Case 2: hidden=128 (already lane-dense) exercises the row-tiled path.
    hidden2 = 128
    x2 = jax.random.normal(k2, (batch, seq, hidden2), dtype=jnp.float32)
    a_2b = (1.0 + 0.02 * jnp.arange(hidden2, dtype=jnp.float32))
    b_2b = (0.005 * jnp.arange(hidden2, dtype=jnp.float32))
    out2 = jax.block_until_ready(layer_norm(x2, a_2b, b_2b, eps=eps))
    ref2 = reference(x2, a_2b, b_2b)
    assert jnp.allclose(out2, ref2, atol=1e-4, rtol=1e-4), "row path mismatch"

    print("KERNEL_OK")
</pallas_src>

<mosaic_0001>
module attributes {stable_mosaic.version = 11 : i64} {
  func.func @_layernorm_packed_kernel(%arg0: i32, %arg1: memref<4x128xf32, #tpu.memory_space<vmem>>, %arg2: memref<1x128xf32, #tpu.memory_space<vmem>>, %arg3: memref<1x128xf32, #tpu.memory_space<vmem>>, %arg4: memref<128x4xf32, #tpu.memory_space<vmem>>, %arg5: memref<4x128xf32, #tpu.memory_space<vmem>>, %arg6: memref<4x128xf32, #tpu.memory_space<vmem>>) attributes {dimension_semantics = [#tpu.dimension_semantics<parallel>], iteration_bounds = array<i64: 1>, scalar_prefetch = 0 : i64, scratch_operands = 0 : i64, tpu.core_type = #tpu.core_type<tc>, window_params = [{transform_indices = @transform_0, window_bounds = array<i64: 4, 128>}, {pipeline_mode = #tpu.pipeline_mode<synchronous>, transform_indices = @transform_1, window_bounds = array<i64: 1, 128>}, {pipeline_mode = #tpu.pipeline_mode<synchronous>, transform_indices = @transform_2, window_bounds = array<i64: 1, 128>}, {pipeline_mode = #tpu.pipeline_mode<synchronous>, transform_indices = @transform_3, window_bounds = array<i64: 128, 4>}, {pipeline_mode = #tpu.pipeline_mode<synchronous>, transform_indices = @transform_4, window_bounds = array<i64: 4, 128>}, {transform_indices = @transform_5, window_bounds = array<i64: 4, 128>}]} {
    %c0 = arith.constant 0 : index
    %c0_0 = arith.constant 0 : index
    %0 = vector.load %arg1[%c0, %c0_0] : memref<4x128xf32, #tpu.memory_space<vmem>>, vector<4x128xf32>
    %c0_1 = arith.constant 0 : index
    %c0_2 = arith.constant 0 : index
    %1 = vector.load %arg4[%c0_1, %c0_2] : memref<128x4xf32, #tpu.memory_space<vmem>>, vector<128x4xf32>
    %c0_3 = arith.constant 0 : index
    %c0_4 = arith.constant 0 : index
    %2 = vector.load %arg5[%c0_3, %c0_4] : memref<4x128xf32, #tpu.memory_space<vmem>>, vector<4x128xf32>
    %cst = arith.constant dense<0.000000e+00> : vector<4x4xf32>
    %3 = tpu.matmul %0, %1, %cst {dimension_numbers = #tpu.dot_dimension_numbers<[1], [0], [0], [1], [0, 0, 1, 1], [], []>, precision = #tpu.contract_precision<fp32>} : vector<4x128xf32>, vector<128x4xf32>, vector<4x4xf32> -> vector<4x4xf32>
    %cst_5 = arith.constant 3.200000e+01 : f32
    %4 = vector.broadcast %cst_5 : f32 to vector<4x4xf32>
    %5 = arith.divf %3, %4 : vector<4x4xf32>
    %cst_6 = arith.constant dense<0.000000e+00> : vector<4x128xf32>
    %6 = tpu.matmul %5, %2, %cst_6 {dimension_numbers = #tpu.dot_dimension_numbers<[1], [0], [0], [1], [0, 0, 1, 1], [], []>, precision = #tpu.contract_precision<fp32>} : vector<4x4xf32>, vector<4x128xf32>, vector<4x128xf32> -> vector<4x128xf32>
    %7 = arith.subf %0, %6 : vector<4x128xf32>
    %8 = arith.mulf %7, %7 : vector<4x128xf32>
    %cst_7 = arith.constant dense<0.000000e+00> : vector<4x4xf32>
    %9 = tpu.matmul %8, %1, %cst_7 {dimension_numbers = #tpu.dot_dimension_numbers<[1], [0], [0], [1], [0, 0, 1, 1], [], []>, precision = #tpu.contract_precision<fp32>} : vector<4x128xf32>, vector<128x4xf32>, vector<4x4xf32> -> vector<4x4xf32>
    %cst_8 = arith.constant 3.100000e+01 : f32
    %10 = vector.broadcast %cst_8 : f32 to vector<4x4xf32>
    %11 = arith.divf %9, %10 : vector<4x4xf32>
    %12 = math.sqrt %11 : vector<4x4xf32>
    %cst_9 = arith.constant 9.99999997E-7 : f32
    %13 = vector.broadcast %cst_9 : f32 to vector<4x4xf32>
    %14 = arith.addf %12, %13 : vector<4x4xf32>
    %cst_10 = arith.constant 1.000000e+00 : f32
    %15 = vector.broadcast %cst_10 : f32 to vector<4x4xf32>
    %16 = arith.divf %15, %14 : vector<4x4xf32>
    %cst_11 = arith.constant dense<0.000000e+00> : vector<4x128xf32>
    %17 = tpu.matmul %16, %2, %cst_11 {dimension_numbers = #tpu.dot_dimension_numbers<[1], [0], [0], [1], [0, 0, 1, 1], [], []>, precision = #tpu.contract_precision<fp32>} : vector<4x4xf32>, vector<4x128xf32>, vector<4x128xf32> -> vector<4x128xf32>
    %c0_12 = arith.constant 0 : index
    %c0_13 = arith.constant 0 : index
    %18 = vector.load %arg2[%c0_12, %c0_13] : memref<1x128xf32, #tpu.memory_space<vmem>>, vector<1x128xf32>
    %c0_14 = arith.constant 0 : index
    %c0_15 = arith.constant 0 : index
    %19 = vector.load %arg3[%c0_14, %c0_15] : memref<1x128xf32, #tpu.memory_space<vmem>>, vector<1x128xf32>
    %20 = arith.subf %0, %6 : vector<4x128xf32>
    %21 = arith.mulf %20, %17 : vector<4x128xf32>
    %22 = vector.broadcast %18 : vector<1x128xf32> to vector<4x128xf32>
    %23 = arith.mulf %21, %22 : vector<4x128xf32>
    %24 = vector.broadcast %19 : vector<1x128xf32> to vector<4x128xf32>
    %25 = arith.addf %23, %24 : vector<4x128xf32>
    %c0_16 = arith.constant 0 : index
    %c0_17 = arith.constant 0 : index
    %26 = vector.load %arg6[%c0_16, %c0_17] : memref<4x128xf32, #tpu.memory_space<vmem>>, vector<4x128xf32>
    tpu.vector_store %arg6[%c0_16, %c0_17], %25 {strides = array<i32>} : memref<4x128xf32, #tpu.memory_space<vmem>>, vector<4x128xf32>,
    return
  }
  func.func @transform_0(%arg0: i32) -> (i32, i32) {
    %c0_i32 = arith.constant 0 : i32
    %c0_i32_0 = arith.constant 0 : i32
    return %arg0, %c0_i32 : i32, i32
  }
  func.func @transform_1(%arg0: i32) -> (i32, i32) {
    %c0_i32 = arith.constant 0 : i32
    %c0_i32_0 = arith.constant 0 : i32
    %c0_i32_1 = arith.constant 0 : i32
    return %c0_i32, %c0_i32_0 : i32, i32
  }
  func.func @transform_2(%arg0: i32) -> (i32, i32) {
    %c0_i32 = arith.constant 0 : i32
    %c0_i32_0 = arith.constant 0 : i32
    %c0_i32_1 = arith.constant 0 : i32
    return %c0_i32, %c0_i32_0 : i32, i32
  }
  func.func @transform_3(%arg0: i32) -> (i32, i32) {
    %c0_i32 = arith.constant 0 : i32
    %c0_i32_0 = arith.constant 0 : i32
    %c0_i32_1 = arith.constant 0 : i32
    return %c0_i32, %c0_i32_0 : i32, i32
  }
  func.func @transform_4(%arg0: i32) -> (i32, i32) {
    %c0_i32 = arith.constant 0 : i32
    %c0_i32_0 = arith.constant 0 : i32
    %c0_i32_1 = arith.constant 0 : i32
    return %c0_i32, %c0_i32_0 : i32, i32
  }
  func.func @transform_5(%arg0: i32) -> (i32, i32) {
    %c0_i32 = arith.constant 0 : i32
    %c0_i32_0 = arith.constant 0 : i32
    return %arg0, %c0_i32 : i32, i32
  }
}

</mosaic_0001>

<llo_original>
// kernel: tpu_custom_call.1
$region0: #{tpu_custom_call.1}
  #allocation0 [shape = 'u32[]', space=smem, size = 0x4, offset = 0x4, fixed_abs, tag = 'smem constant byte address 0x4 - core index']
  #allocation1 [shape = 'u32[144,128]{1,0:T(1,128)}', space=vmem, size = 0x12000, scoped, tag = 'internal scratch']
  %s0 = inlined_call_operand.vmem [shape: f32[4,128], index: 0, kind: input, shape index: {}]
  %s1 = inlined_call_operand.vmem [shape: f32[1,128], index: 1, kind: input, shape index: {}]
  %s2 = inlined_call_operand.vmem [shape: f32[1,128], index: 2, kind: input, shape index: {}]
  %s3 = inlined_call_operand.vmem [shape: f32[128,4], index: 3, kind: input, shape index: {}]
  %s4 = inlined_call_operand.vmem [shape: f32[4,128], index: 4, kind: input, shape index: {}]
  %s5 = inlined_call_operand.hbm [shape: f32[4,128], index: 5, kind: output, shape index: {}]
  %s6 = sld [smem:[#allocation0]]
  $region30: #{tpu_custom_call.1} parent=0
    _
  %s8 = ssub.s32 1, %s6
  %s9 = scalar_select 0, %s8, %s6
  $region1: #{tpu_custom_call.1} parent=0
    #allocation2 [shape = 'u8[2048]{0}', space=vmem, size = 0x800, scoped, tag = 'output window, operand 0, single buffered']
    #allocation3 [shape = 's32[1]{0}', space=sflag, size = 0x4, scoped, tag = 'scoped memory for tpu_custom_call.1']
    %10 = vsyncpa [#allocation3], 0
    // Predicated region
    $region2: #{tpu_custom_call.1} parent=1 // pred_check
      _
    $region3: #{tpu_custom_call.1} parent=1 // pred_check_branch
      %12 = sbr.rel (0) target = $region5
    $region4: #{tpu_custom_call.1} parent=1 // pred_region
      _
    $region5: #{tpu_custom_call.1} parent=1 // pred_fallthru
      _
    // Predicated region
    $region6: #{tpu_custom_call.1} parent=1 // pred_check
      _
    $region7: #{tpu_custom_call.1} parent=1 // pred_check_branch
      %14 = sbr.rel (0) target = $region9
    $region8: #{tpu_custom_call.1} parent=1 // pred_region
      _
    $region9: #{tpu_custom_call.1} parent=1 // pred_fallthru
      _
    // Predicated region
    $region10: #{tpu_custom_call.1} parent=1 // pred_check
      _
    $region11: #{tpu_custom_call.1} parent=1 // pred_check_branch
      %16 = sbr.rel (0) target = $region13
    $region12: #{tpu_custom_call.1} parent=1 // pred_region
      _
    $region13: #{tpu_custom_call.1} parent=1 // pred_fallthru
      _
    // Predicated region
    $region14: #{tpu_custom_call.1} parent=1 // pred_check
      _
    $region15: #{tpu_custom_call.1} parent=1 // pred_check_branch
      %18 = sbr.rel (0) target = $region17
    $region16: #{tpu_custom_call.1} parent=1 // pred_region
      _
    $region17: #{tpu_custom_call.1} parent=1 // pred_fallthru
      _
    // Predicated region
    $region18: #{tpu_custom_call.1} parent=1 // pred_check
      _
    $region19: #{tpu_custom_call.1} parent=1 // pred_check_branch
      %20 = sbr.rel (0) target = $region21
    $region20: #{tpu_custom_call.1} parent=1 // pred_region
      _
    $region21: #{tpu_custom_call.1} parent=1 // pred_fallthru
      _
    %v21 = vld [vmem:[%s0] sm:$0xf]
    %v22 = vld [vmem:[%s3] sm:$0xff]
    %v23 = vld [vmem:[%s3 + $0x8] sm:$0xff]
    %v24 = vld [vmem:[%s3 + $0x10] sm:$0xff]
    %v25 = vld [vmem:[%s3 + $0x18] sm:$0xff]
    %v26 = vld [vmem:[%s3 + $0x20] sm:$0xff]
    %v27 = vld [vmem:[%s3 + $0x28] sm:$0xff]
    %v28 = vld [vmem:[%s3 + $0x30] sm:$0xff]
    %v29 = vld [vmem:[%s3 + $0x38] sm:$0xff]
    %v30 = vld [vmem:[%s3 + $0x40] sm:$0xff]
    %v31 = vld [vmem:[%s3 + $0x48] sm:$0xff]
    %v32 = vld [vmem:[%s3 + $0x50] sm:$0xff]
    %v33 = vld [vmem:[%s3 + $0x58] sm:$0xff]
    %v34 = vld [vmem:[%s3 + $0x60] sm:$0xff]
    %v35 = vld [vmem:[%s3 + $0x68] sm:$0xff]
    %v36 = vld [vmem:[%s3 + $0x70] sm:$0xff]
    %v37 = vld [vmem:[%s3 + $0x78] sm:$0xff]
    %v38 = vld [vmem:[%s4] sm:$0xf]
    %39 = vmatprep.subr.mxu0 0.0
    %v40 = vand.u32 %v22, 4294901760
    %41 = vmatpush1.msra.mxu0 %v40
    %42 = vmatprep.subr.mxu0 0.0
    %v43 = vand.u32 %v23, 4294901760
    %44 = vmatpush1.msra.mxu0 %v43
    %45 = vmatprep.subr.mxu0 0.0
    %v46 = vand.u32 %v24, 4294901760
    %47 = vmatpush1.msra.mxu0 %v46
    %48 = vmatprep.subr.mxu0 0.0
    %v49 = vand.u32 %v25, 4294901760
    %50 = vmatpush1.msra.mxu0 %v49
    %51 = vmatprep.subr.mxu0 0.0
    %v52 = vand.u32 %v26, 4294901760
    %53 = vmatpush1.msra.mxu0 %v52
    %54 = vmatprep.subr.mxu0 0.0
    %v55 = vand.u32 %v27, 4294901760
    %56 = vmatpush1.msra.mxu0 %v55
    %57 = vmatprep.subr.mxu0 0.0
    %v58 = vand.u32 %v28, 4294901760
    %59 = vmatpush1.msra.mxu0 %v58
    %60 = vmatprep.subr.mxu0 0.0
    %v61 = vand.u32 %v29, 4294901760
    %62 = vmatpush1.msra.mxu0 %v61
    %63 = vmatprep.subr.mxu0 0.0
    %v64 = vand.u32 %v30, 4294901760
    %65 = vmatpush1.msra.mxu0 %v64
    %66 = vmatprep.subr.mxu0 0.0
    %v67 = vand.u32 %v31, 4294901760
    %68 = vmatpush1.msra.mxu0 %v67
    %69 = vmatprep.subr.mxu0 0.0
    %v70 = vand.u32 %v32, 4294901760
    %71 = vmatpush1.msra.mxu0 %v70
    %72 = vmatprep.subr.mxu0 0.0
    %v73 = vand.u32 %v33, 4294901760
    %74 = vmatpush1.msra.mxu0 %v73
    %75 = vmatprep.subr.mxu0 0.0
    %v76 = vand.u32 %v34, 4294901760
    %77 = vmatpush1.msra.mxu0 %v76
    %78 = vmatprep.subr.mxu0 0.0
    %v79 = vand.u32 %v35, 4294901760
    %80 = vmatpush1.msra.mxu0 %v79
    %81 = vmatprep.subr.mxu0 0.0
    %v82 = vand.u32 %v36, 4294901760
    %83 = vmatpush1.msra.mxu0 %v82
    %84 = vmatprep.subr.mxu0 0.0
    %v85 = vand.u32 %v37, 4294901760
    %86 = vmatpush1.msra.mxu0 %v85
    %87 = vmatprep.subr.mxu0 0.0
    %88 = vmatpush1.msra.mxu0 0.0
    %89 = vmatprep.subr.mxu0 0.0
    %90 = vmatpush1.msra.mxu0 0.0
    %91 = vmatprep.subr.mxu0 0.0
    %92 = vmatpush1.msra.mxu0 0.0
    %93 = vmatprep.subr.mxu0 0.0
    %94 = vmatpush1.msra.mxu0 0.0
    %95 = vmatprep.subr.mxu0 0.0
    %96 = vmatpush1.msra.mxu0 0.0
    %97 = vmatprep.subr.mxu0 0.0
    %98 = vmatpush1.msra.mxu0 0.0
    %99 = vmatprep.subr.mxu0 0.0
    %100 = vmatpush1.msra.mxu0 0.0
    %101 = vmatprep.subr.mxu0 0.0
    %102 = vmatpush1.msra.mxu0 0.0
    %103 = vmatprep.subr.mxu0 0.0
    %104 = vmatpush1.msra.mxu0 0.0
    %105 = vmatprep.subr.mxu0 0.0
    %106 = vmatpush1.msra.mxu0 0.0
    %107 = vmatprep.subr.mxu0 0.0
    %108 = vmatpush1.msra.mxu0 0.0
    %109 = vmatprep.subr.mxu0 0.0
    %110 = vmatpush1.msra.mxu0 0.0
    %111 = vmatprep.subr.mxu0 0.0
    %112 = vmatpush1.msra.mxu0 0.0
    %113 = vmatprep.subr.mxu0 0.0
    %114 = vmatpush1.msra.mxu0 0.0
    %115 = vmatprep.subr.mxu0 0.0
    %116 = vmatpush1.msra.mxu0 0.0
    %117 = vmatprep.subr.mxu0 0.0
    %118 = vmatpush1.msra.mxu0 0.0
    %119 = vmatprep.mubr.f32.mxu0 0.0
    %v120 = vand.u32 %v21, 4294901760
    %v121 = vsub.f32 %v21, %v120
    %v122 = vand.u32 %v121, 4294901760
    %v123 = vsub.f32 %v121, %v122
    %v124 = vand.u32 %v123, 4294901760
    %125 = vmatmul.mubr.f32.gmra.mrb[0].mxu0 %v124
    %v126 = vpop.f32.mrb[0].mxu0
    %v127 = vadd.f32 0.0, %v126
    %v128 = vpop.f32.mrb[0].mxu0
    %129 = vdwg.mxu0
    %130 = vmatprep.subr.mxu0 0.0
    %v131 = vand.u32 %v22, 4294901760
    %v132 = vsub.f32 %v22, %v131
    %v133 = vand.u32 %v132, 4294901760
    %v134 = vsub.f32 %v132, %v133
    %v135 = vand.u32 %v134, 4294901760
    %136 = vmatpush1.msra.mxu0 %v135
    %137 = vmatprep.subr.mxu0 0.0
    %v138 = vand.u32 %v23, 4294901760
    %v139 = vsub.f32 %v23, %v138
    %v140 = vand.u32 %v139, 4294901760
    %v141 = vsub.f32 %v139, %v140
    %v142 = vand.u32 %v141, 4294901760
    %143 = vmatpush1.msra.mxu0 %v142
    %144 = vmatprep.subr.mxu0 0.0
    %v145 = vand.u32 %v24, 4294901760
    %v146 = vsub.f32 %v24, %v145
    %v147 = vand.u32 %v146, 4294901760
    %v148 = vsub.f32 %v146, %v147
    %v149 = vand.u32 %v148, 4294901760
    %150 = vmatpush1.msra.mxu0 %v149
    %151 = vmatprep.subr.mxu0 0.0
    %v152 = vand.u32 %v25, 4294901760
    %v153 = vsub.f32 %v25, %v152
    %v154 = vand.u32 %v153, 4294901760
    %v155 = vsub.f32 %v153, %v154
    %v156 = vand.u32 %v155, 4294901760
    %157 = vmatpush1.msra.mxu0 %v156
    %158 = vmatprep.subr.mxu0 0.0
    %v159 = vand.u32 %v26, 4294901760
    %v160 = vsub.f32 %v26, %v159
    %v161 = vand.u32 %v160, 4294901760
    %v162 = vsub.f32 %v160, %v161
    %v163 = vand.u32 %v162, 4294901760
    %164 = vmatpush1.msra.mxu0 %v163
    %165 = vmatprep.subr.mxu0 0.0
    %v166 = vand.u32 %v27, 4294901760
    %v167 = vsub.f32 %v27, %v166
    %v168 = vand.u32 %v167, 4294901760
    %v169 = vsub.f32 %v167, %v168
    %v170 = vand.u32 %v169, 4294901760
    %171 = vmatpush1.msra.mxu0 %v170
    %172 = vmatprep.subr.mxu0 0.0
    %v173 = vand.u32 %v28, 4294901760
    %v174 = vsub.f32 %v28, %v173
    %v175 = vand.u32 %v174, 4294901760
    %v176 = vsub.f32 %v174, %v175
    %v177 = vand.u32 %v176, 4294901760
    %178 = vmatpush1.msra.mxu0 %v177
    %179 = vmatprep.subr.mxu0 0.0
    %v180 = vand.u32 %v29, 4294901760
    %v181 = vsub.f32 %v29, %v180
    %v182 = vand.u32 %v181, 4294901760
    %v183 = vsub.f32 %v181, %v182
    %v184 = vand.u32 %v183, 4294901760
    %185 = vmatpush1.msra.mxu0 %v184
    %186 = vmatprep.subr.mxu0 0.0
    %v187 = vand.u32 %v30, 4294901760
    %v188 = vsub.f32 %v30, %v187
    %v189 = vand.u32 %v188, 4294901760
    %v190 = vsub.f32 %v188, %v189
    %v191 = vand.u32 %v190, 4294901760
    %192 = vmatpush1.msra.mxu0 %v191
    %193 = vmatprep.subr.mxu0 0.0
    %v194 = vand.u32 %v31, 4294901760
    %v195 = vsub.f32 %v31, %v194
    %v196 = vand.u32 %v195, 4294901760
    %v197 = vsub.f32 %v195, %v196
    %v198 = vand.u32 %v197, 4294901760
    %199 = vmatpush1.msra.mxu0 %v198
    %200 = vmatprep.subr.mxu0 0.0
    %v201 = vand.u32 %v32, 4294901760
    %v202 = vsub.f32 %v32, %v201
    %v203 = vand.u32 %v202, 4294901760
    %v204 = vsub.f32 %v202, %v203
    %v205 = vand.u32 %v204, 4294901760
    %206 = vmatpush1.msra.mxu0 %v205
    %207 = vmatprep.subr.mxu0 0.0
    %v208 = vand.u32 %v33, 4294901760
    %v209 = vsub.f32 %v33, %v208
    %v210 = vand.u32 %v209, 4294901760
    %v211 = vsub.f32 %v209, %v210
    %v212 = vand.u32 %v211, 4294901760
    %213 = vmatpush1.msra.mxu0 %v212
    %214 = vmatprep.subr.mxu0 0.0
    %v215 = vand.u32 %v34, 4294901760
    %v216 = vsub.f32 %v34, %v215
    %v217 = vand.u32 %v216, 4294901760
    %v218 = vsub.f32 %v216, %v217
    %v219 = vand.u32 %v218, 4294901760
    %220 = vmatpush1.msra.mxu0 %v219
    %221 = vmatprep.subr.mxu0 0.0
    %v222 = vand.u32 %v35, 4294901760
    %v223 = vsub.f32 %v35, %v222
    %v224 = vand.u32 %v223, 4294901760
    %v225 = vsub.f32 %v223, %v224
    %v226 = vand.u32 %v225, 4294901760
    %227 = vmatpush1.msra.mxu0 %v226
    %228 = vmatprep.subr.mxu0 0.0
    %v229 = vand.u32 %v36, 4294901760
    %v230 = vsub.f32 %v36, %v229
    %v231 = vand.u32 %v230, 4294901760
    %v232 = vsub.f32 %v230, %v231
    %v233 = vand.u32 %v232, 4294901760
    %234 = vmatpush1.msra.mxu0 %v233
    %235 = vmatprep.subr.mxu0 0.0
    %v236 = vand.u32 %v37, 4294901760
    %v237 = vsub.f32 %v37, %v236
    %v238 = vand.u32 %v237, 4294901760
    %v239 = vsub.f32 %v237, %v238
    %v240 = vand.u32 %v239, 4294901760
    %241 = vmatpush1.msra.mxu0 %v240
    %242 = vmatprep.subr.mxu0 0.0
    %243 = vmatpush1.msra.mxu0 0.0
    %244 = vmatprep.subr.mxu0 0.0
    %245 = vmatpush1.msra.mxu0 0.0
    %246 = vmatprep.subr.mxu0 0.0
    %247 = vmatpush1.msra.mxu0 0.0
    %248 = vmatprep.subr.mxu0 0.0
    %249 = vmatpush1.msra.mxu0 0.0
    %250 = vmatprep.subr.mxu0 0.0
    %251 = vmatpush1.msra.mxu0 0.0
    %252 = vmatprep.subr.mxu0 0.0
    %253 = vmatpush1.msra.mxu0 0.0
    %254 = vmatprep.subr.mxu0 0.0
    %255 = vmatpush1.msra.mxu0 0.0
    %256 = vmatprep.subr.mxu0 0.0
    %257 = vmatpush1.msra.mxu0 0.0
    %258 = vmatprep.subr.mxu0 0.0
    %259 = vmatpush1.msra.mxu0 0.0
    %260 = vmatprep.subr.mxu0 0.0
    %261 = vmatpush1.msra.mxu0 0.0
    %262 = vmatprep.subr.mxu0 0.0
    %263 = vmatpush1.msra.mxu0 0.0
    %264 = vmatprep.subr.mxu0 0.0
    %265 = vmatpush1.msra.mxu0 0.0
    %266 = vmatprep.subr.mxu0 0.0
    %267 = vmatpush1.msra.mxu0 0.0
    %268 = vmatprep.subr.mxu0 0.0
    %269 = vmatpush1.msra.mxu0 0.0
    %270 = vmatprep.subr.mxu0 0.0
    %271 = vmatpush1.msra.mxu0 0.0
    %272 = vmatprep.subr.mxu0 0.0
    %273 = vmatpush1.msra.mxu0 0.0
    %274 = vmatprep.mubr.f32.mxu0 0.0
    %v275 = vand.u32 %v21, 4294901760
    %276 = vmatmul.mubr.f32.gmra.mrb[0].mxu0 %v275
    %v277 = vpop.f32.mrb[0].mxu0
    %v278 = vadd.f32 %v127, %v277
    %v279 = vpop.f32.mrb[0].mxu0
    %280 = vdwg.mxu0
    %281 = vmatprep.subr.mxu0 0.0
    %v282 = vand.u32 %v22, 4294901760
    %v283 = vsub.f32 %v22, %v282
    %284 = vmatpush1.msra.mxu0 %v283
    %285 = vmatprep.subr.mxu0 0.0
    %v286 = vand.u32 %v23, 4294901760
    %v287 = vsub.f32 %v23, %v286
    %288 = vmatpush1.msra.mxu0 %v287
    %289 = vmatprep.subr.mxu0 0.0
    %v290 = vand.u32 %v24, 4294901760
    %v291 = vsub.f32 %v24, %v290
    %292 = vmatpush1.msra.mxu0 %v291
    %293 = vmatprep.subr.mxu0 0.0
    %v294 = vand.u32 %v25, 4294901760
    %v295 = vsub.f32 %v25, %v294
    %296 = vmatpush1.msra.mxu0 %v295
    %297 = vmatprep.subr.mxu0 0.0
    %v298 = vand.u32 %v26, 4294901760
    %v299 = vsub.f32 %v26, %v298
    %300 = vmatpush1.msra.mxu0 %v299
    %301 = vmatprep.subr.mxu0 0.0
    %v302 = vand.u32 %v27, 4294901760
    %v303 = vsub.f32 %v27, %v302
    %304 = vmatpush1.msra.mxu0 %v303
    %305 = vmatprep.subr.mxu0 0.0
    %v306 = vand.u32 %v28, 4294901760
    %v307 = vsub.f32 %v28, %v306
    %308 = vmatpush1.msra.mxu0 %v307
    %309 = vmatprep.subr.mxu0 0.0
    %v310 = vand.u32 %v29, 4294901760
    %v311 = vsub.f32 %v29, %v310
    %312 = vmatpush1.msra.mxu0 %v311
    %313 = vmatprep.subr.mxu0 0.0
    %v314 = vand.u32 %v30, 4294901760
    %v315 = vsub.f32 %v30, %v314
    %316 = vmatpush1.msra.mxu0 %v315
    %317 = vmatprep.subr.mxu0 0.0
    %v318 = vand.u32 %v31, 4294901760
    %v319 = vsub.f32 %v31, %v318
    %320 = vmatpush1.msra.mxu0 %v319
    %321 = vmatprep.subr.mxu0 0.0
    %v322 = vand.u32 %v32, 4294901760
    %v323 = vsub.f32 %v32, %v322
    %324 = vmatpush1.msra.mxu0 %v323
    %325 = vmatprep.subr.mxu0 0.0
    %v326 = vand.u32 %v33, 4294901760
    %v327 = vsub.f32 %v33, %v326
    %328 = vmatpush1.msra.mxu0 %v327
    %329 = vmatprep.subr.mxu0 0.0
    %v330 = vand.u32 %v34, 4294901760
    %v331 = vsub.f32 %v34, %v330
    %332 = vmatpush1.msra.mxu0 %v331
    %333 = vmatprep.subr.mxu0 0.0
    %v334 = vand.u32 %v35, 4294901760
    %v335 = vsub.f32 %v35, %v334
    %336 = vmatpush1.msra.mxu0 %v335
    %337 = vmatprep.subr.mxu0 0.0
    %v338 = vand.u32 %v36, 4294901760
    %v339 = vsub.f32 %v36, %v338
    %340 = vmatpush1.msra.mxu0 %v339
    %341 = vmatprep.subr.mxu0 0.0
    %v342 = vand.u32 %v37, 4294901760
    %v343 = vsub.f32 %v37, %v342
    %344 = vmatpush1.msra.mxu0 %v343
    %345 = vmatprep.subr.mxu0 0.0
    %346 = vmatpush1.msra.mxu0 0.0
    %347 = vmatprep.subr.mxu0 0.0
    %348 = vmatpush1.msra.mxu0 0.0
    %349 = vmatprep.subr.mxu0 0.0
    %350 = vmatpush1.msra.mxu0 0.0
    %351 = vmatprep.subr.mxu0 0.0
    %352 = vmatpush1.msra.mxu0 0.0
    %353 = vmatprep.subr.mxu0 0.0
    %354 = vmatpush1.msra.mxu0 0.0
    %355 = vmatprep.subr.mxu0 0.0
    %356 = vmatpush1.msra.mxu0 0.0
    %357 = vmatprep.subr.mxu0 0.0
    %358 = vmatpush1.msra.mxu0 0.0
    %359 = vmatprep.subr.mxu0 0.0
    %360 = vmatpush1.msra.mxu0 0.0
    %361 = vmatprep.subr.mxu0 0.0
    %362 = vmatpush1.msra.mxu0 0.0
    %363 = vmatprep.subr.mxu0 0.0
    %364 = vmatpush1.msra.mxu0 0.0
    %365 = vmatprep.subr.mxu0 0.0
    %366 = vmatpush1.msra.mxu0 0.0
    %367 = vmatprep.subr.mxu0 0.0
    %368 = vmatpush1.msra.mxu0 0.0
    %369 = vmatprep.subr.mxu0 0.0
    %370 = vmatpush1.msra.mxu0 0.0
    %371 = vmatprep.subr.mxu0 0.0
    %372 = vmatpush1.msra.mxu0 0.0
    %373 = vmatprep.subr.mxu0 0.0
    %374 = vmatpush1.msra.mxu0 0.0
    %375 = vmatprep.subr.mxu0 0.0
    %376 = vmatpush1.msra.mxu0 0.0
    %377 = vmatprep.mubr.f32.mxu0 0.0
    %v378 = vand.u32 %v21, 4294901760
    %v379 = vsub.f32 %v21, %v378
    %380 = vmatmul.mubr.f32.gmra.mrb[0].mxu0 %v379
    %v381 = vpop.f32.mrb[0].mxu0
    %v382 = vadd.f32 %v278, %v381
    %v383 = vpop.f32.mrb[0].mxu0
    %384 = vdwg.mxu0
    %385 = vmatprep.subr.mxu0 0.0
    %v386 = vand.u32 %v22, 4294901760
    %387 = vmatpush1.msra.mxu0 %v386
    %388 = vmatprep.subr.mxu0 0.0
    %v389 = vand.u32 %v23, 4294901760
    %390 = vmatpush1.msra.mxu0 %v389
    %391 = vmatprep.subr.mxu0 0.0
    %v392 = vand.u32 %v24, 4294901760
    %393 = vmatpush1.msra.mxu0 %v392
    %394 = vmatprep.subr.mxu0 0.0
    %v395 = vand.u32 %v25, 4294901760
    %396 = vmatpush1.msra.mxu0 %v395
    %397 = vmatprep.subr.mxu0 0.0
    %v398 = vand.u32 %v26, 4294901760
    %399 = vmatpush1.msra.mxu0 %v398
    %400 = vmatprep.subr.mxu0 0.0
    %v401 = vand.u32 %v27, 4294901760
    %402 = vmatpush1.msra.mxu0 %v401
    %403 = vmatprep.subr.mxu0 0.0
    %v404 = vand.u32 %v28, 4294901760
    %405 = vmatpush1.msra.mxu0 %v404
    %406 = vmatprep.subr.mxu0 0.0
    %v407 = vand.u32 %v29, 4294901760
    %408 = vmatpush1.msra.mxu0 %v407
    %409 = vmatprep.subr.mxu0 0.0
    %v410 = vand.u32 %v30, 4294901760
    %411 = vmatpush1.msra.mxu0 %v410
    %412 = vmatprep.subr.mxu0 0.0
    %v413 = vand.u32 %v31, 4294901760
    %414 = vmatpush1.msra.mxu0 %v413
    %415 = vmatprep.subr.mxu0 0.0
    %v416 = vand.u32 %v32, 4294901760
    %417 = vmatpush1.msra.mxu0 %v416
    %418 = vmatprep.subr.mxu0 0.0
    %v419 = vand.u32 %v33, 4294901760
    %420 = vmatpush1.msra.mxu0 %v419
    %421 = vmatprep.subr.mxu0 0.0
    %v422 = vand.u32 %v34, 4294901760
    %423 = vmatpush1.msra.mxu0 %v422
    %424 = vmatprep.subr.mxu0 0.0
    %v425 = vand.u32 %v35, 4294901760
    %426 = vmatpush1.msra.mxu0 %v425
    %427 = vmatprep.subr.mxu0 0.0
    %v428 = vand.u32 %v36, 4294901760
    %429 = vmatpush1.msra.mxu0 %v428
    %430 = vmatprep.subr.mxu0 0.0
    %v431 = vand.u32 %v37, 4294901760
    %432 = vmatpush1.msra.mxu0 %v431
    %433 = vmatprep.subr.mxu0 0.0
    %434 = vmatpush1.msra.mxu0 0.0
    %435 = vmatprep.subr.mxu0 0.0
    %436 = vmatpush1.msra.mxu0 0.0
    %437 = vmatprep.subr.mxu0 0.0
    %438 = vmatpush1.msra.mxu0 0.0
    %439 = vmatprep.subr.mxu0 0.0
    %440 = vmatpush1.msra.mxu0 0.0
    %441 = vmatprep.subr.mxu0 0.0
    %442 = vmatpush1.msra.mxu0 0.0
    %443 = vmatprep.subr.mxu0 0.0
    %444 = vmatpush1.msra.mxu0 0.0
    %445 = vmatprep.subr.mxu0 0.0
    %446 = vmatpush1.msra.mxu0 0.0
    %447 = vmatprep.subr.mxu0 0.0
    %448 = vmatpush1.msra.mxu0 0.0
    %449 = vmatprep.subr.mxu0 0.0
    %450 = vmatpush1.msra.mxu0 0.0
    %451 = vmatprep.subr.mxu0 0.0
    %452 = vmatpush1.msra.mxu0 0.0
    %453 = vmatprep.subr.mxu0 0.0
    %454 = vmatpush1.msra.mxu0 0.0
    %455 = vmatprep.subr.mxu0 0.0
    %456 = vmatpush1.msra.mxu0 0.0
    %457 = vmatprep.subr.mxu0 0.0
    %458 = vmatpush1.msra.mxu0 0.0
    %459 = vmatprep.subr.mxu0 0.0
    %460 = vmatpush1.msra.mxu0 0.0
    %461 = vmatprep.subr.mxu0 0.0
    %462 = vmatpush1.msra.mxu0 0.0
    %463 = vmatprep.subr.mxu0 0.0
    %464 = vmatpush1.msra.mxu0 0.0
    %465 = vmatprep.mubr.f32.mxu0 0.0
    %v466 = vand.u32 %v21, 4294901760
    %v467 = vsub.f32 %v21, %v466
    %v468 = vand.u32 %v467, 4294901760
    %469 = vmatmul.mubr.f32.gmra.mrb[0].mxu0 %v468
    %v470 = vpop.f32.mrb[0].mxu0
    %v471 = vadd.f32 %v382, %v470
    %v472 = vpop.f32.mrb[0].mxu0
    %473 = vdwg.mxu0
    %474 = vmatprep.subr.mxu0 0.0
    %v475 = vand.u32 %v22, 4294901760
    %v476 = vsub.f32 %v22, %v475
    %v477 = vand.u32 %v476, 4294901760
    %478 = vmatpush1.msra.mxu0 %v477
    %479 = vmatprep.subr.mxu0 0.0
    %v480 = vand.u32 %v23, 4294901760
    %v481 = vsub.f32 %v23, %v480
    %v482 = vand.u32 %v481, 4294901760
    %483 = vmatpush1.msra.mxu0 %v482
    %484 = vmatprep.subr.mxu0 0.0
    %v485 = vand.u32 %v24, 4294901760
    %v486 = vsub.f32 %v24, %v485
    %v487 = vand.u32 %v486, 4294901760
    %488 = vmatpush1.msra.mxu0 %v487
    %489 = vmatprep.subr.mxu0 0.0
    %v490 = vand.u32 %v25, 4294901760
    %v491 = vsub.f32 %v25, %v490
    %v492 = vand.u32 %v491, 4294901760
    %493 = vmatpush1.msra.mxu0 %v492
    %494 = vmatprep.subr.mxu0 0.0
    %v495 = vand.u32 %v26, 4294901760
    %v496 = vsub.f32 %v26, %v495
    %v497 = vand.u32 %v496, 4294901760
    %498 = vmatpush1.msra.mxu0 %v497
    %499 = vmatprep.subr.mxu0 0.0
    %v500 = vand.u32 %v27, 4294901760
    %v501 = vsub.f32 %v27, %v500
    %v502 = vand.u32 %v501, 4294901760
    %503 = vmatpush1.msra.mxu0 %v502
    %504 = vmatprep.subr.mxu0 0.0
    %v505 = vand.u32 %v28, 4294901760
    %v506 = vsub.f32 %v28, %v505
    %v507 = vand.u32 %v506, 4294901760
    %508 = vmatpush1.msra.mxu0 %v507
    %509 = vmatprep.subr.mxu0 0.0
    %v510 = vand.u32 %v29, 4294901760
    %v511 = vsub.f32 %v29, %v510
    %v512 = vand.u32 %v511, 4294901760
    %513 = vmatpush1.msra.mxu0 %v512
    %514 = vmatprep.subr.mxu0 0.0
    %v515 = vand.u32 %v30, 4294901760
    %v516 = vsub.f32 %v30, %v515
    %v517 = vand.u32 %v516, 4294901760
    %518 = vmatpush1.msra.mxu0 %v517
    %519 = vmatprep.subr.mxu0 0.0
    %v520 = vand.u32 %v31, 4294901760
    %v521 = vsub.f32 %v31, %v520
    %v522 = vand.u32 %v521, 4294901760
    %523 = vmatpush1.msra.mxu0 %v522
    %524 = vmatprep.subr.mxu0 0.0
    %v525 = vand.u32 %v32, 4294901760
    %v526 = vsub.f32 %v32, %v525
    %v527 = vand.u32 %v526, 4294901760
    %528 = vmatpush1.msra.mxu0 %v527
    %529 = vmatprep.subr.mxu0 0.0
    %v530 = vand.u32 %v33, 4294901760
    %v531 = vsub.f32 %v33, %v530
    %v532 = vand.u32 %v531, 4294901760
    %533 = vmatpush1.msra.mxu0 %v532
    %534 = vmatprep.subr.mxu0 0.0
    %v535 = vand.u32 %v34, 4294901760
    %v536 = vsub.f32 %v34, %v535
    %v537 = vand.u32 %v536, 4294901760
    %538 = vmatpush1.msra.mxu0 %v537
    %539 = vmatprep.subr.mxu0 0.0
    %v540 = vand.u32 %v35, 4294901760
    %v541 = vsub.f32 %v35, %v540
    %v542 = vand.u32 %v541, 4294901760
    %543 = vmatpush1.msra.mxu0 %v542
    %544 = vmatprep.subr.mxu0 0.0
    %v545 = vand.u32 %v36, 4294901760
    %v546 = vsub.f32 %v36, %v545
    %v547 = vand.u32 %v546, 4294901760
    %548 = vmatpush1.msra.mxu0 %v547
    %549 = vmatprep.subr.mxu0 0.0
    %v550 = vand.u32 %v37, 4294901760
    %v551 = vsub.f32 %v37, %v550
    %v552 = vand.u32 %v551, 4294901760
    %553 = vmatpush1.msra.mxu0 %v552
    %554 = vmatprep.subr.mxu0 0.0
    %555 = vmatpush1.msra.mxu0 0.0
    %556 = vmatprep.subr.mxu0 0.0
    %557 = vmatpush1.msra.mxu0 0.0
    %558 = vmatprep.subr.mxu0 0.0
    %559 = vmatpush1.msra.mxu0 0.0
    %560 = vmatprep.subr.mxu0 0.0
    %561 = vmatpush1.msra.mxu0 0.0
    %562 = vmatprep.subr.mxu0 0.0
    %563 = vmatpush1.msra.mxu0 0.0
    %564 = vmatprep.subr.mxu0 0.0
    %565 = vmatpush1.msra.mxu0 0.0
    %566 = vmatprep.subr.mxu0 0.0
    %567 = vmatpush1.msra.mxu0 0.0
    %568 = vmatprep.subr.mxu0 0.0
    %569 = vmatpush1.msra.mxu0 0.0
    %570 = vmatprep.subr.mxu0 0.0
    %571 = vmatpush1.msra.mxu0 0.0
    %572 = vmatprep.subr.mxu0 0.0
    %573 = vmatpush1.msra.mxu0 0.0
    %574 = vmatprep.subr.mxu0 0.0
    %575 = vmatpush1.msra.mxu0 0.0
    %576 = vmatprep.subr.mxu0 0.0
    %577 = vmatpush1.msra.mxu0 0.0
    %578 = vmatprep.subr.mxu0 0.0
    %579 = vmatpush1.msra.mxu0 0.0
    %580 = vmatprep.subr.mxu0 0.0
    %581 = vmatpush1.msra.mxu0 0.0
    %582 = vmatprep.subr.mxu0 0.0
    %583 = vmatpush1.msra.mxu0 0.0
    %584 = vmatprep.subr.mxu0 0.0
    %585 = vmatpush1.msra.mxu0 0.0
    %586 = vmatprep.mubr.f32.mxu0 0.0
    %v587 = vand.u32 %v21, 4294901760
    %588 = vmatmul.mubr.f32.gmra.mrb[0].mxu0 %v587
    %v589 = vpop.f32.mrb[0].mxu0
    %v590 = vadd.f32 %v471, %v589
    %v591 = vpop.f32.mrb[0].mxu0
    %592 = vdwg.mxu0
    %593 = vmatprep.subr.mxu0 0.0
    %v594 = vand.u32 %v22, 4294901760
    %595 = vmatpush1.msra.mxu0 %v594
    %596 = vmatprep.subr.mxu0 0.0
    %v597 = vand.u32 %v23, 4294901760
    %598 = vmatpush1.msra.mxu0 %v597
    %599 = vmatprep.subr.mxu0 0.0
    %v600 = vand.u32 %v24, 4294901760
    %601 = vmatpush1.msra.mxu0 %v600
    %602 = vmatprep.subr.mxu0 0.0
    %v603 = vand.u32 %v25, 4294901760
    %604 = vmatpush1.msra.mxu0 %v603
    %605 = vmatprep.subr.mxu0 0.0
    %v606 = vand.u32 %v26, 4294901760
    %607 = vmatpush1.msra.mxu0 %v606
    %608 = vmatprep.subr.mxu0 0.0
    %v609 = vand.u32 %v27, 4294901760
    %610 = vmatpush1.msra.mxu0 %v609
    %611 = vmatprep.subr.mxu0 0.0
    %v612 = vand.u32 %v28, 4294901760
    %613 = vmatpush1.msra.mxu0 %v612
    %614 = vmatprep.subr.mxu0 0.0
    %v615 = vand.u32 %v29, 4294901760
    %616 = vmatpush1.msra.mxu0 %v615
    %617 = vmatprep.subr.mxu0 0.0
    %v618 = vand.u32 %v30, 4294901760
    %619 = vmatpush1.msra.mxu0 %v618
    %620 = vmatprep.subr.mxu0 0.0
    %v621 = vand.u32 %v31, 4294901760
    %622 = vmatpush1.msra.mxu0 %v621
    %623 = vmatprep.subr.mxu0 0.0
    %v624 = vand.u32 %v32, 4294901760
    %625 = vmatpush1.msra.mxu0 %v624
    %626 = vmatprep.subr.mxu0 0.0
    %v627 = vand.u32 %v33, 4294901760
    %628 = vmatpush1.msra.mxu0 %v627
    %629 = vmatprep.subr.mxu0 0.0
    %v630 = vand.u32 %v34, 4294901760
    %631 = vmatpush1.msra.mxu0 %v630
    %632 = vmatprep.subr.mxu0 0.0
    %v633 = vand.u32 %v35, 4294901760
    %634 = vmatpush1.msra.mxu0 %v633
    %635 = vmatprep.subr.mxu0 0.0
    %v636 = vand.u32 %v36, 4294901760
    %637 = vmatpush1.msra.mxu0 %v636
    %638 = vmatprep.subr.mxu0 0.0
    %v639 = vand.u32 %v37, 4294901760
    %640 = vmatpush1.msra.mxu0 %v639
    %641 = vmatprep.subr.mxu0 0.0
    %642 = vmatpush1.msra.mxu0 0.0
    %643 = vmatprep.subr.mxu0 0.0
    %644 = vmatpush1.msra.mxu0 0.0
    %645 = vmatprep.subr.mxu0 0.0
    %646 = vmatpush1.msra.mxu0 0.0
    %647 = vmatprep.subr.mxu0 0.0
    %648 = vmatpush1.msra.mxu0 0.0
    %649 = vmatprep.subr.mxu0 0.0
    %650 = vmatpush1.msra.mxu0 0.0
    %651 = vmatprep.subr.mxu0 0.0
    %652 = vmatpush1.msra.mxu0 0.0
    %653 = vmatprep.subr.mxu0 0.0
    %654 = vmatpush1.msra.mxu0 0.0
    %655 = vmatprep.subr.mxu0 0.0
    %656 = vmatpush1.msra.mxu0 0.0
    %657 = vmatprep.subr.mxu0 0.0
    %658 = vmatpush1.msra.mxu0 0.0
    %659 = vmatprep.subr.mxu0 0.0
    %660 = vmatpush1.msra.mxu0 0.0
    %661 = vmatprep.subr.mxu0 0.0
    %662 = vmatpush1.msra.mxu0 0.0
    %663 = vmatprep.subr.mxu0 0.0
    %664 = vmatpush1.msra.mxu0 0.0
    %665 = vmatprep.subr.mxu0 0.0
    %666 = vmatpush1.msra.mxu0 0.0
    %667 = vmatprep.subr.mxu0 0.0
    %668 = vmatpush1.msra.mxu0 0.0
    %669 = vmatprep.subr.mxu0 0.0
    %670 = vmatpush1.msra.mxu0 0.0
    %671 = vmatprep.subr.mxu0 0.0
    %672 = vmatpush1.msra.mxu0 0.0
    %673 = vmatprep.mubr.f32.mxu0 0.0
    %v674 = vand.u32 %v21, 4294901760
    %675 = vmatmul.mubr.f32.gmra.mrb[0].mxu0 %v674
    %v676 = vpop.f32.mrb[0].mxu0
    %v677 = vadd.f32 %v590, %v676
    %v678 = vpop.f32.mrb[0].mxu0
    %679 = vdwg.mxu0
    %v680 = vrcp.pop 32.0
    %v681 = vmul.f32 %v677, %v680
    %vm682 = vcmask 31744
    %v684 = vsel %vm682, %v681, 0
    %vm686 = vcmask 1043456
    %v688 = vsel %vm686, %v38, 0
    %690 = vmatprep.subr.mxu0 0.0
    %v691 = vand.u32 %v688, 4294901760
    %692 = vmatpush1.msra.mxu0 %v691
    %693 = vmatprep.subr.mxu0 0.0
    %694 = vmatpush1.msra.mxu0 0.0
    %695 = vmatprep.subr.mxu0 0.0
    %696 = vmatpush1.msra.mxu0 0.0
    %697 = vmatprep.subr.mxu0 0.0
    %698 = vmatpush1.msra.mxu0 0.0
    %699 = vmatprep.subr.mxu0 0.0
    %700 = vmatpush1.msra.mxu0 0.0
    %701 = vmatprep.subr.mxu0 0.0
    %702 = vmatpush1.msra.mxu0 0.0
    %703 = vmatprep.subr.mxu0 0.0
    %704 = vmatpush1.msra.mxu0 0.0
    %705 = vmatprep.subr.mxu0 0.0
    %706 = vmatpush1.msra.mxu0 0.0
    %707 = vmatprep.subr.mxu0 0.0
    %708 = vmatpush1.msra.mxu0 0.0
    %709 = vmatprep.subr.mxu0 0.0
    %710 = vmatpush1.msra.mxu0 0.0
    %711 = vmatprep.subr.mxu0 0.0
    %712 = vmatpush1.msra.mxu0 0.0
    %713 = vmatprep.subr.mxu0 0.0
    %714 = vmatpush1.msra.mxu0 0.0
    %715 = vmatprep.subr.mxu0 0.0
    %716 = vmatpush1.msra.mxu0 0.0
    %717 = vmatprep.subr.mxu0 0.0
    %718 = vmatpush1.msra.mxu0 0.0
    %719 = vmatprep.subr.mxu0 0.0
    %720 = vmatpush1.msra.mxu0 0.0
    %721 = vmatprep.subr.mxu0 0.0
    %722 = vmatpush1.msra.mxu0 0.0
    %723 = vmatprep.subr.mxu0 0.0
    %724 = vmatpush1.msra.mxu0 0.0
    %725 = vmatprep.subr.mxu0 0.0
    %726 = vmatpush1.msra.mxu0 0.0
    %727 = vmatprep.subr.mxu0 0.0
    %728 = vmatpush1.msra.mxu0 0.0
    %729 = vmatprep.subr.mxu0 0.0
    %730 = vmatpush1.msra.mxu0 0.0
    %731 = vmatprep.subr.mxu0 0.0
    %732 = vmatpush1.msra.mxu0 0.0
    %733 = vmatprep.subr.mxu0 0.0
    %734 = vmatpush1.msra.mxu0 0.0
    %735 = vmatprep.subr.mxu0 0.0
    %736 = vmatpush1.msra.mxu0 0.0
    %737 = vmatprep.subr.mxu0 0.0
    %738 = vmatpush1.msra.mxu0 0.0
    %739 = vmatprep.subr.mxu0 0.0
    %740 = vmatpush1.msra.mxu0 0.0
    %741 = vmatprep.subr.mxu0 0.0
    %742 = vmatpush1.msra.mxu0 0.0
    %743 = vmatprep.subr.mxu0 0.0
    %744 = vmatpush1.msra.mxu0 0.0
    %745 = vmatprep.subr.mxu0 0.0
    %746 = vmatpush1.msra.mxu0 0.0
    %747 = vmatprep.subr.mxu0 0.0
    %748 = vmatpush1.msra.mxu0 0.0
    %749 = vmatprep.subr.mxu0 0.0
    %750 = vmatpush1.msra.mxu0 0.0
    %751 = vmatprep.subr.mxu0 0.0
    %752 = vmatpush1.msra.mxu0 0.0
    %753 = vmatprep.subr.mxu0 0.0
    %754 = vmatpush1.msra.mxu0 0.0
    %755 = vmatprep.mubr.f32.mxu0 0.0
    %v756 = vand.u32 %v684, 4294901760
    %v757 = vsub.f32 %v684, %v756
    %v758 = vand.u32 %v757, 4294901760
    %v759 = vsub.f32 %v757, %v758
    %v760 = vand.u32 %v759, 4294901760
    %761 = vmatmul.mubr.f32.gmra.mrb[0].mxu0 %v760
    %v762 = vpop.f32.mrb[0].mxu0
    %v763 = vadd.f32 0.0, %v762
    %v764 = vpop.f32.mrb[0].mxu0
    %765 = vdwg.mxu0
    %766 = vmatprep.subr.mxu0 0.0
    %v767 = vand.u32 %v688, 4294901760
    %v768 = vsub.f32 %v688, %v767
    %v769 = vand.u32 %v768, 4294901760
    %v770 = vsub.f32 %v768, %v769
    %v771 = vand.u32 %v770, 4294901760
    %772 = vmatpush1.msra.mxu0 %v771
    %773 = vmatprep.subr.mxu0 0.0
    %774 = vmatpush1.msra.mxu0 0.0
    %775 = vmatprep.subr.mxu0 0.0
    %776 = vmatpush1.msra.mxu0 0.0
    %777 = vmatprep.subr.mxu0 0.0
    %778 = vmatpush1.msra.mxu0 0.0
    %779 = vmatprep.subr.mxu0 0.0
    %780 = vmatpush1.msra.mxu0 0.0
    %781 = vmatprep.subr.mxu0 0.0
    %782 = vmatpush1.msra.mxu0 0.0
    %783 = vmatprep.subr.mxu0 0.0
    %784 = vmatpush1.msra.mxu0 0.0
    %785 = vmatprep.subr.mxu0 0.0
    %786 = vmatpush1.msra.mxu0 0.0
    %787 = vmatprep.subr.mxu0 0.0
    %788 = vmatpush1.msra.mxu0 0.0
    %789 = vmatprep.subr.mxu0 0.0
    %790 = vmatpush1.msra.mxu0 0.0
    %791 = vmatprep.subr.mxu0 0.0
    %792 = vmatpush1.msra.mxu0 0.0
    %793 = vmatprep.subr.mxu0 0.0
    %794 = vmatpush1.msra.mxu0 0.0
    %795 = vmatprep.subr.mxu0 0.0
    %796 = vmatpush1.msra.mxu0 0.0
    %797 = vmatprep.subr.mxu0 0.0
    %798 = vmatpush1.msra.mxu0 0.0
    %799 = vmatprep.subr.mxu0 0.0
    %800 = vmatpush1.msra.mxu0 0.0
    %801 = vmatprep.subr.mxu0 0.0
    %802 = vmatpush1.msra.mxu0 0.0
    %803 = vmatprep.subr.mxu0 0.0
    %804 = vmatpush1.msra.mxu0 0.0
    %805 = vmatprep.subr.mxu0 0.0
    %806 = vmatpush1.msra.mxu0 0.0
    %807 = vmatprep.subr.mxu0 0.0
    %808 = vmatpush1.msra.mxu0 0.0
    %809 = vmatprep.subr.mxu0 0.0
    %810 = vmatpush1.msra.mxu0 0.0
    %811 = vmatprep.subr.mxu0 0.0
    %812 = vmatpush1.msra.mxu0 0.0
    %813 = vmatprep.subr.mxu0 0.0
    %814 = vmatpush1.msra.mxu0 0.0
    %815 = vmatprep.subr.mxu0 0.0
    %816 = vmatpush1.msra.mxu0 0.0
    %817 = vmatprep.subr.mxu0 0.0
    %818 = vmatpush1.msra.mxu0 0.0
    %819 = vmatprep.subr.mxu0 0.0
    %820 = vmatpush1.msra.mxu0 0.0
    %821 = vmatprep.subr.mxu0 0.0
    %822 = vmatpush1.msra.mxu0 0.0
    %823 = vmatprep.subr.mxu0 0.0
    %824 = vmatpush1.msra.mxu0 0.0
    %825 = vmatprep.subr.mxu0 0.0
    %826 = vmatpush1.msra.mxu0 0.0
    %827 = vmatprep.subr.mxu0 0.0
    %828 = vmatpush1.msra.mxu0 0.0
    %829 = vmatprep.subr.mxu0 0.0
    %830 = vmatpush1.msra.mxu0 0.0
    %831 = vmatprep.subr.mxu0 0.0
    %832 = vmatpush1.msra.mxu0 0.0
    %833 = vmatprep.subr.mxu0 0.0
    %834 = vmatpush1.msra.mxu0 0.0
    %835 = vmatprep.mubr.f32.mxu0 0.0
    %v836 = vand.u32 %v684, 4294901760
    %837 = vmatmul.mubr.f32.gmra.mrb[0].mxu0 %v836
    %v838 = vpop.f32.mrb[0].mxu0
    %v839 = vadd.f32 %v763, %v838
    %v840 = vpop.f32.mrb[0].mxu0
    %841 = vdwg.mxu0
    %842 = vmatprep.subr.mxu0 0.0
    %v843 = vand.u32 %v688, 4294901760
    %v844 = vsub.f32 %v688, %v843
    %845 = vmatpush1.msra.mxu0 %v844
    %846 = vmatprep.subr.mxu0 0.0
    %847 = vmatpush1.msra.mxu0 0.0
    %848 = vmatprep.subr.mxu0 0.0
    %849 = vmatpush1.msra.mxu0 0.0
    %850 = vmatprep.subr.mxu0 0.0
    %851 = vmatpush1.msra.mxu0 0.0
    %852 = vmatprep.subr.mxu0 0.0
    %853 = vmatpush1.msra.mxu0 0.0
    %854 = vmatprep.subr.mxu0 0.0
    %855 = vmatpush1.msra.mxu0 0.0
    %856 = vmatprep.subr.mxu0 0.0
    %857 = vmatpush1.msra.mxu0 0.0
    %858 = vmatprep.subr.mxu0 0.0
    %859 = vmatpush1.msra.mxu0 0.0
    %860 = vmatprep.subr.mxu0 0.0
    %861 = vmatpush1.msra.mxu0 0.0
    %862 = vmatprep.subr.mxu0 0.0
    %863 = vmatpush1.msra.mxu0 0.0
    %864 = vmatprep.subr.mxu0 0.0
    %865 = vmatpush1.msra.mxu0 0.0
    %866 = vmatprep.subr.mxu0 0.0
    %867 = vmatpush1.msra.mxu0 0.0
    %868 = vmatprep.subr.mxu0 0.0
    %869 = vmatpush1.msra.mxu0 0.0
    %870 = vmatprep.subr.mxu0 0.0
    %871 = vmatpush1.msra.mxu0 0.0
    %872 = vmatprep.subr.mxu0 0.0
    %873 = vmatpush1.msra.mxu0 0.0
    %874 = vmatprep.subr.mxu0 0.0
    %875 = vmatpush1.msra.mxu0 0.0
    %876 = vmatprep.subr.mxu0 0.0
    %877 = vmatpush1.msra.mxu0 0.0
    %878 = vmatprep.subr.mxu0 0.0
    %879 = vmatpush1.msra.mxu0 0.0
    %880 = vmatprep.subr.mxu0 0.0
    %881 = vmatpush1.msra.mxu0 0.0
    %882 = vmatprep.subr.mxu0 0.0
    %883 = vmatpush1.msra.mxu0 0.0
    %884 = vmatprep.subr.mxu0 0.0
    %885 = vmatpush1.msra.mxu0 0.0
    %886 = vmatprep.subr.mxu0 0.0
    %887 = vmatpush1.msra.mxu0 0.0
    %888 = vmatprep.subr.mxu0 0.0
    %889 = vmatpush1.msra.mxu0 0.0
    %890 = vmatprep.subr.mxu0 0.0
    %891 = vmatpush1.msra.mxu0 0.0
    %892 = vmatprep.subr.mxu0 0.0
    %893 = vmatpush1.msra.mxu0 0.0
    %894 = vmatprep.subr.mxu0 0.0
    %895 = vmatpush1.msra.mxu0 0.0
    %896 = vmatprep.subr.mxu0 0.0
    %897 = vmatpush1.msra.mxu0 0.0
    %898 = vmatprep.subr.mxu0 0.0
    %899 = vmatpush1.msra.mxu0 0.0
    %900 = vmatprep.subr.mxu0 0.0
    %901 = vmatpush1.msra.mxu0 0.0
    %902 = vmatprep.subr.mxu0 0.0
    %903 = vmatpush1.msra.mxu0 0.0
    %904 = vmatprep.subr.mxu0 0.0
    %905 = vmatpush1.msra.mxu0 0.0
    %906 = vmatprep.subr.mxu0 0.0
    %907 = vmatpush1.msra.mxu0 0.0
    %908 = vmatprep.mubr.f32.mxu0 0.0
    %v909 = vand.u32 %v684, 4294901760
    %v910 = vsub.f32 %v684, %v909
    %911 = vmatmul.mubr.f32.gmra.mrb[0].mxu0 %v910
    %v912 = vpop.f32.mrb[0].mxu0
    %v913 = vadd.f32 %v839, %v912
    %v914 = vpop.f32.mrb[0].mxu0
    %915 = vdwg.mxu0
    %916 = vmatprep.subr.mxu0 0.0
    %v917 = vand.u32 %v688, 4294901760
    %918 = vmatpush1.msra.mxu0 %v917
    %919 = vmatprep.subr.mxu0 0.0
    %920 = vmatpush1.msra.mxu0 0.0
    %921 = vmatprep.subr.mxu0 0.0
    %922 = vmatpush1.msra.mxu0 0.0
    %923 = vmatprep.subr.mxu0 0.0
    %924 = vmatpush1.msra.mxu0 0.0
    %925 = vmatprep.subr.mxu0 0.0
    %926 = vmatpush1.msra.mxu0 0.0
    %927 = vmatprep.subr.mxu0 0.0
    %928 = vmatpush1.msra.mxu0 0.0
    %929 = vmatprep.subr.mxu0 0.0
    %930 = vmatpush1.msra.mxu0 0.0
    %931 = vmatprep.subr.mxu0 0.0
    %932 = vmatpush1.msra.mxu0 0.0
    %933 = vmatprep.subr.mxu0 0.0
    %934 = vmatpush1.msra.mxu0 0.0
    %935 = vmatprep.subr.mxu0 0.0
    %936 = vmatpush1.msra.mxu0 0.0
    %937 = vmatprep.subr.mxu0 0.0
    %938 = vmatpush1.msra.mxu0 0.0
    %939 = vmatprep.subr.mxu0 0.0
    %940 = vmatpush1.msra.mxu0 0.0
    %941 = vmatprep.subr.mxu0 0.0
    %942 = vmatpush1.msra.mxu0 0.0
    %943 = vmatprep.subr.mxu0 0.0
    %944 = vmatpush1.msra.mxu0 0.0
    %945 = vmatprep.subr.mxu0 0.0
    %946 = vmatpush1.msra.mxu0 0.0
    %947 = vmatprep.subr.mxu0 0.0
    %948 = vmatpush1.msra.mxu0 0.0
    %949 = vmatprep.subr.mxu0 0.0
    %950 = vmatpush1.msra.mxu0 0.0
    %951 = vmatprep.subr.mxu0 0.0
    %952 = vmatpush1.msra.mxu0 0.0
    %953 = vmatprep.subr.mxu0 0.0
    %954 = vmatpush1.msra.mxu0 0.0
    %955 = vmatprep.subr.mxu0 0.0
    %956 = vmatpush1.msra.mxu0 0.0
    %957 = vmatprep.subr.mxu0 0.0
    %958 = vmatpush1.msra.mxu0 0.0
    %959 = vmatprep.subr.mxu0 0.0
    %960 = vmatpush1.msra.mxu0 0.0
    %961 = vmatprep.subr.mxu0 0.0
    %962 = vmatpush1.msra.mxu0 0.0
    %963 = vmatprep.subr.mxu0 0.0
    %964 = vmatpush1.msra.mxu0 0.0
    %965 = vmatprep.subr.mxu0 0.0
    %966 = vmatpush1.msra.mxu0 0.0
    %967 = vmatprep.subr.mxu0 0.0
    %968 = vmatpush1.msra.mxu0 0.0
    %969 = vmatprep.subr.mxu0 0.0
    %970 = vmatpush1.msra.mxu0 0.0
    %971 = vmatprep.subr.mxu0 0.0
    %972 = vmatpush1.msra.mxu0 0.0
    %973 = vmatprep.subr.mxu0 0.0
    %974 = vmatpush1.msra.mxu0 0.0
    %975 = vmatprep.subr.mxu0 0.0
    %976 = vmatpush1.msra.mxu0 0.0
    %977 = vmatprep.subr.mxu0 0.0
    %978 = vmatpush1.msra.mxu0 0.0
    %979 = vmatprep.subr.mxu0 0.0
    %980 = vmatpush1.msra.mxu0 0.0
    %981 = vmatprep.mubr.f32.mxu0 0.0
    %v982 = vand.u32 %v684, 4294901760
    %v983 = vsub.f32 %v684, %v982
    %v984 = vand.u32 %v983, 4294901760
    %985 = vmatmul.mubr.f32.gmra.mrb[0].mxu0 %v984
    %v986 = vpop.f32.mrb[0].mxu0
    %v987 = vadd.f32 %v913, %v986
    %v988 = vpop.f32.mrb[0].mxu0
    %989 = vdwg.mxu0
    %990 = vmatprep.subr.mxu0 0.0
    %v991 = vand.u32 %v688, 4294901760
    %v992 = vsub.f32 %v688, %v991
    %v993 = vand.u32 %v992, 4294901760
    %994 = vmatpush1.msra.mxu0 %v993
    %995 = vmatprep.subr.mxu0 0.0
    %996 = vmatpush1.msra.mxu0 0.0
    %997 = vmatprep.subr.mxu0 0.0
    %998 = vmatpush1.msra.mxu0 0.0
    %999 = vmatprep.subr.mxu0 0.0
    %1000 = vmatpush1.msra.mxu0 0.0
    %1001 = vmatprep.subr.mxu0 0.0
    %1002 = vmatpush1.msra.mxu0 0.0
    %1003 = vmatprep.subr.mxu0 0.0
    %1004 = vmatpush1.msra.mxu0 0.0
    %1005 = vmatprep.subr.mxu0 0.0
    %1006 = vmatpush1.msra.mxu0 0.0
    %1007 = vmatprep.subr.mxu0 0.0
    %1008 = vmatpush1.msra.mxu0 0.0
    %1009 = vmatprep.subr.mxu0 0.0
    %1010 = vmatpush1.msra.mxu0 0.0
    %1011 = vmatprep.subr.mxu0 0.0
    %1012 = vmatpush1.msra.mxu0 0.0
    %1013 = vmatprep.subr.mxu0 0.0
    %1014 = vmatpush1.msra.mxu0 0.0
    %1015 = vmatprep.subr.mxu0 0.0
    %1016 = vmatpush1.msra.mxu0 0.0
    %1017 = vmatprep.subr.mxu0 0.0
    %1018 = vmatpush1.msra.mxu0 0.0
    %1019 = vmatprep.subr.mxu0 0.0
    %1020 = vmatpush1.msra.mxu0 0.0
    %1021 = vmatprep.subr.mxu0 0.0
    %1022 = vmatpush1.msra.mxu0 0.0
    %1023 = vmatprep.subr.mxu0 0.0
    %1024 = vmatpush1.msra.mxu0 0.0
    %1025 = vmatprep.subr.mxu0 0.0
    %1026 = vmatpush1.msra.mxu0 0.0
    %1027 = vmatprep.subr.mxu0 0.0
    %1028 = vmatpush1.msra.mxu0 0.0
    %1029 = vmatprep.subr.mxu0 0.0
    %1030 = vmatpush1.msra.mxu0 0.0
    %1031 = vmatprep.subr.mxu0 0.0
    %1032 = vmatpush1.msra.mxu0 0.0
    %1033 = vmatprep.subr.mxu0 0.0
    %1034 = vmatpush1.msra.mxu0 0.0
    %1035 = vmatprep.subr.mxu0 0.0
    %1036 = vmatpush1.msra.mxu0 0.0
    %1037 = vmatprep.subr.mxu0 0.0
    %1038 = vmatpush1.msra.mxu0 0.0
    %1039 = vmatprep.subr.mxu0 0.0
    %1040 = vmatpush1.msra.mxu0 0.0
    %1041 = vmatprep.subr.mxu0 0.0
    %1042 = vmatpush1.msra.mxu0 0.0
    %1043 = vmatprep.subr.mxu0 0.0
    %1044 = vmatpush1.msra.mxu0 0.0
    %1045 = vmatprep.subr.mxu0 0.0
    %1046 = vmatpush1.msra.mxu0 0.0
    %1047 = vmatprep.subr.mxu0 0.0
    %1048 = vmatpush1.msra.mxu0 0.0
    %1049 = vmatprep.subr.mxu0 0.0
    %1050 = vmatpush1.msra.mxu0 0.0
    %1051 = vmatprep.subr.mxu0 0.0
    %1052 = vmatpush1.msra.mxu0 0.0
    %1053 = vmatprep.subr.mxu0 0.0
    %1054 = vmatpush1.msra.mxu0 0.0
    %1055 = vmatprep.subr.mxu0 0.0
    %1056 = vmatpush1.msra.mxu0 0.0
    %1057 = vmatprep.mubr.f32.mxu0 0.0
    %v1058 = vand.u32 %v684, 4294901760
    %1059 = vmatmul.mubr.f32.gmra.mrb[0].mxu0 %v1058
    %v1060 = vpop.f32.mrb[0].mxu0
    %v1061 = vadd.f32 %v987, %v1060
    %v1062 = vpop.f32.mrb[0].mxu0
    %1063 = vdwg.mxu0
    %1064 = vmatprep.subr.mxu0 0.0
    %v1065 = vand.u32 %v688, 4294901760
    %1066 = vmatpush1.msra.mxu0 %v1065
    %1067 = vmatprep.subr.mxu0 0.0
    %1068 = vmatpush1.msra.mxu0 0.0
    %1069 = vmatprep.subr.mxu0 0.0
    %1070 = vmatpush1.msra.mxu0 0.0
    %1071 = vmatprep.subr.mxu0 0.0
    %1072 = vmatpush1.msra.mxu0 0.0
    %1073 = vmatprep.subr.mxu0 0.0
    %1074 = vmatpush1.msra.mxu0 0.0
    %1075 = vmatprep.subr.mxu0 0.0
    %1076 = vmatpush1.msra.mxu0 0.0
    %1077 = vmatprep.subr.mxu0 0.0
    %1078 = vmatpush1.msra.mxu0 0.0
    %1079 = vmatprep.subr.mxu0 0.0
    %1080 = vmatpush1.msra.mxu0 0.0
    %1081 = vmatprep.subr.mxu0 0.0
    %1082 = vmatpush1.msra.mxu0 0.0
    %1083 = vmatprep.subr.mxu0 0.0
    %1084 = vmatpush1.msra.mxu0 0.0
    %1085 = vmatprep.subr.mxu0 0.0
    %1086 = vmatpush1.msra.mxu0 0.0
    %1087 = vmatprep.subr.mxu0 0.0
    %1088 = vmatpush1.msra.mxu0 0.0
    %1089 = vmatprep.subr.mxu0 0.0
    %1090 = vmatpush1.msra.mxu0 0.0
    %1091 = vmatprep.subr.mxu0 0.0
    %1092 = vmatpush1.msra.mxu0 0.0
    %1093 = vmatprep.subr.mxu0 0.0
    %1094 = vmatpush1.msra.mxu0 0.0
    %1095 = vmatprep.subr.mxu0 0.0
    %1096 = vmatpush1.msra.mxu0 0.0
    %1097 = vmatprep.subr.mxu0 0.0
    %1098 = vmatpush1.msra.mxu0 0.0
    %1099 = vmatprep.subr.mxu0 0.0
    %1100 = vmatpush1.msra.mxu0 0.0
    %1101 = vmatprep.subr.mxu0 0.0
    %1102 = vmatpush1.msra.mxu0 0.0
    %1103 = vmatprep.subr.mxu0 0.0
    %1104 = vmatpush1.msra.mxu0 0.0
    %1105 = vmatprep.subr.mxu0 0.0
    %1106 = vmatpush1.msra.mxu0 0.0
    %1107 = vmatprep.subr.mxu0 0.0
    %1108 = vmatpush1.msra.mxu0 0.0
    %1109 = vmatprep.subr.mxu0 0.0
    %1110 = vmatpush1.msra.mxu0 0.0
    %1111 = vmatprep.subr.mxu0 0.0
    %1112 = vmatpush1.msra.mxu0 0.0
    %1113 = vmatprep.subr.mxu0 0.0
    %1114 = vmatpush1.msra.mxu0 0.0
    %1115 = vmatprep.subr.mxu0 0.0
    %1116 = vmatpush1.msra.mxu0 0.0
    %1117 = vmatprep.subr.mxu0 0.0
    %1118 = vmatpush1.msra.mxu0 0.0
    %1119 = vmatprep.subr.mxu0 0.0
    %1120 = vmatpush1.msra.mxu0 0.0
    %1121 = vmatprep.subr.mxu0 0.0
    %1122 = vmatpush1.msra.mxu0 0.0
    %1123 = vmatprep.subr.mxu0 0.0
    %1124 = vmatpush1.msra.mxu0 0.0
    %1125 = vmatprep.subr.mxu0 0.0
    %1126 = vmatpush1.msra.mxu0 0.0
    %1127 = vmatprep.subr.mxu0 0.0
    %1128 = vmatpush1.msra.mxu0 0.0
    %1129 = vmatprep.mubr.f32.mxu0 0.0
    %v1130 = vand.u32 %v684, 4294901760
    %1131 = vmatmul.mubr.f32.gmra.mrb[0].mxu0 %v1130
    %v1132 = vpop.f32.mrb[0].mxu0
    %v1133 = vadd.f32 %v1061, %v1132
    %v1134 = vpop.f32.mrb[0].mxu0
    %1135 = vdwg.mxu0
    %v1136 = vsub.f32 %v21, %v1133
    %v1137 = vmul.f32 %v1136, %v1136
    %1138 = vmatprep.subr.mxu0 0.0
    %v1139 = vand.u32 %v22, 4294901760
    %1140 = vmatpush1.msra.mxu0 %v1139
    %1141 = vmatprep.subr.mxu0 0.0
    %v1142 = vand.u32 %v23, 4294901760
    %1143 = vmatpush1.msra.mxu0 %v1142
    %1144 = vmatprep.subr.mxu0 0.0
    %v1145 = vand.u32 %v24, 4294901760
    %1146 = vmatpush1.msra.mxu0 %v1145
    %1147 = vmatprep.subr.mxu0 0.0
    %v1148 = vand.u32 %v25, 4294901760
    %1149 = vmatpush1.msra.mxu0 %v1148
    %1150 = vmatprep.subr.mxu0 0.0
    %v1151 = vand.u32 %v26, 4294901760
    %1152 = vmatpush1.msra.mxu0 %v1151
    %1153 = vmatprep.subr.mxu0 0.0
    %v1154 = vand.u32 %v27, 4294901760
    %1155 = vmatpush1.msra.mxu0 %v1154
    %1156 = vmatprep.subr.mxu0 0.0
    %v1157 = vand.u32 %v28, 4294901760
    %1158 = vmatpush1.msra.mxu0 %v1157
    %1159 = vmatprep.subr.mxu0 0.0
    %v1160 = vand.u32 %v29, 4294901760
    %1161 = vmatpush1.msra.mxu0 %v1160
    %1162 = vmatprep.subr.mxu0 0.0
    %v1163 = vand.u32 %v30, 4294901760
    %1164 = vmatpush1.msra.mxu0 %v1163
    %1165 = vmatprep.subr.mxu0 0.0
    %v1166 = vand.u32 %v31, 4294901760
    %1167 = vmatpush1.msra.mxu0 %v1166
    %1168 = vmatprep.subr.mxu0 0.0
    %v1169 = vand.u32 %v32, 4294901760
    %1170 = vmatpush1.msra.mxu0 %v1169
    %1171 = vmatprep.subr.mxu0 0.0
    %v1172 = vand.u32 %v33, 4294901760
    %1173 = vmatpush1.msra.mxu0 %v1172
    %1174 = vmatprep.subr.mxu0 0.0
    %v1175 = vand.u32 %v34, 4294901760
    %1176 = vmatpush1.msra.mxu0 %v1175
    %1177 = vmatprep.subr.mxu0 0.0
    %v1178 = vand.u32 %v35, 4294901760
    %1179 = vmatpush1.msra.mxu0 %v1178
    %1180 = vmatprep.subr.mxu0 0.0
    %v1181 = vand.u32 %v36, 4294901760
    %1182 = vmatpush1.msra.mxu0 %v1181
    %1183 = vmatprep.subr.mxu0 0.0
    %v1184 = vand.u32 %v37, 4294901760
    %1185 = vmatpush1.msra.mxu0 %v1184
    %1186 = vmatprep.subr.mxu0 0.0
    %1187 = vmatpush1.msra.mxu0 0.0
    %1188 = vmatprep.subr.mxu0 0.0
    %1189 = vmatpush1.msra.mxu0 0.0
    %1190 = vmatprep.subr.mxu0 0.0
    %1191 = vmatpush1.msra.mxu0 0.0
    %1192 = vmatprep.subr.mxu0 0.0
    %1193 = vmatpush1.msra.mxu0 0.0
    %1194 = vmatprep.subr.mxu0 0.0
    %1195 = vmatpush1.msra.mxu0 0.0
    %1196 = vmatprep.subr.mxu0 0.0
    %1197 = vmatpush1.msra.mxu0 0.0
    %1198 = vmatprep.subr.mxu0 0.0
    %1199 = vmatpush1.msra.mxu0 0.0
    %1200 = vmatprep.subr.mxu0 0.0
    %1201 = vmatpush1.msra.mxu0 0.0
    %1202 = vmatprep.subr.mxu0 0.0
    %1203 = vmatpush1.msra.mxu0 0.0
    %1204 = vmatprep.subr.mxu0 0.0
    %1205 = vmatpush1.msra.mxu0 0.0
    %1206 = vmatprep.subr.mxu0 0.0
    %1207 = vmatpush1.msra.mxu0 0.0
    %1208 = vmatprep.subr.mxu0 0.0
    %1209 = vmatpush1.msra.mxu0 0.0
    %1210 = vmatprep.subr.mxu0 0.0
    %1211 = vmatpush1.msra.mxu0 0.0
    %1212 = vmatprep.subr.mxu0 0.0
    %1213 = vmatpush1.msra.mxu0 0.0
    %1214 = vmatprep.subr.mxu0 0.0
    %1215 = vmatpush1.msra.mxu0 0.0
    %1216 = vmatprep.subr.mxu0 0.0
    %1217 = vmatpush1.msra.mxu0 0.0
    %1218 = vmatprep.mubr.f32.mxu0 0.0
    %v1219 = vand.u32 %v1137, 4294901760
    %v1220 = vsub.f32 %v1137, %v1219
    %v1221 = vand.u32 %v1220, 4294901760
    %v1222 = vsub.f32 %v1220, %v1221
    %v1223 = vand.u32 %v1222, 4294901760
    %1224 = vmatmul.mubr.f32.gmra.mrb[0].mxu0 %v1223
    %v1225 = vpop.f32.mrb[0].mxu0
    %v1226 = vadd.f32 0.0, %v1225
    %v1227 = vpop.f32.mrb[0].mxu0
    %1228 = vdwg.mxu0
    %1229 = vmatprep.subr.mxu0 0.0
    %v1230 = vand.u32 %v22, 4294901760
    %v1231 = vsub.f32 %v22, %v1230
    %v1232 = vand.u32 %v1231, 4294901760
    %v1233 = vsub.f32 %v1231, %v1232
    %v1234 = vand.u32 %v1233, 4294901760
    %1235 = vmatpush1.msra.mxu0 %v1234
    %1236 = vmatprep.subr.mxu0 0.0
    %v1237 = vand.u32 %v23, 4294901760
    %v1238 = vsub.f32 %v23, %v1237
    %v1239 = vand.u32 %v1238, 4294901760
    %v1240 = vsub.f32 %v1238, %v1239
    %v1241 = vand.u32 %v1240, 4294901760
    %1242 = vmatpush1.msra.mxu0 %v1241
    %1243 = vmatprep.subr.mxu0 0.0
    %v1244 = vand.u32 %v24, 4294901760
    %v1245 = vsub.f32 %v24, %v1244
    %v1246 = vand.u32 %v1245, 4294901760
    %v1247 = vsub.f32 %v1245, %v1246
    %v1248 = vand.u32 %v1247, 4294901760
    %1249 = vmatpush1.msra.mxu0 %v1248
    %1250 = vmatprep.subr.mxu0 0.0
    %v1251 = vand.u32 %v25, 4294901760
    %v1252 = vsub.f32 %v25, %v1251
    %v1253 = vand.u32 %v1252, 4294901760
    %v1254 = vsub.f32 %v1252, %v1253
    %v1255 = vand.u32 %v1254, 4294901760
    %1256 = vmatpush1.msra.mxu0 %v1255
    %1257 = vmatprep.subr.mxu0 0.0
    %v1258 = vand.u32 %v26, 4294901760
    %v1259 = vsub.f32 %v26, %v1258
    %v1260 = vand.u32 %v1259, 4294901760
    %v1261 = vsub.f32 %v1259, %v1260
    %v1262 = vand.u32 %v1261, 4294901760
    %1263 = vmatpush1.msra.mxu0 %v1262
    %1264 = vmatprep.subr.mxu0 0.0
    %v1265 = vand.u32 %v27, 4294901760
    %v1266 = vsub.f32 %v27, %v1265
    %v1267 = vand.u32 %v1266, 4294901760
    %v1268 = vsub.f32 %v1266, %v1267
    %v1269 = vand.u32 %v1268, 4294901760
    %1270 = vmatpush1.msra.mxu0 %v1269
    %1271 = vmatprep.subr.mxu0 0.0
    %v1272 = vand.u32 %v28, 4294901760
    %v1273 = vsub.f32 %v28, %v1272
    %v1274 = vand.u32 %v1273, 4294901760
    %v1275 = vsub.f32 %v1273, %v1274
    %v1276 = vand.u32 %v1275, 4294901760
    %1277 = vmatpush1.msra.mxu0 %v1276
    %1278 = vmatprep.subr.mxu0 0.0
    %v1279 = vand.u32 %v29, 4294901760
    %v1280 = vsub.f32 %v29, %v1279
    %v1281 = vand.u32 %v1280, 4294901760
    %v1282 = vsub.f32 %v1280, %v1281
    %v1283 = vand.u32 %v1282, 4294901760
    %1284 = vmatpush1.msra.mxu0 %v1283
    %1285 = vmatprep.subr.mxu0 0.0
    %v1286 = vand.u32 %v30, 4294901760
    %v1287 = vsub.f32 %v30, %v1286
    %v1288 = vand.u32 %v1287, 4294901760
    %v1289 = vsub.f32 %v1287, %v1288
    %v1290 = vand.u32 %v1289, 4294901760
    %1291 = vmatpush1.msra.mxu0 %v1290
    %1292 = vmatprep.subr.mxu0 0.0
    %v1293 = vand.u32 %v31, 4294901760
    %v1294 = vsub.f32 %v31, %v1293
    %v1295 = vand.u32 %v1294, 4294901760
    %v1296 = vsub.f32 %v1294, %v1295
    %v1297 = vand.u32 %v1296, 4294901760
    %1298 = vmatpush1.msra.mxu0 %v1297
    %1299 = vmatprep.subr.mxu0 0.0
    %v1300 = vand.u32 %v32, 4294901760
    %v1301 = vsub.f32 %v32, %v1300
    %v1302 = vand.u32 %v1301, 4294901760
    %v1303 = vsub.f32 %v1301, %v1302
    %v1304 = vand.u32 %v1303, 4294901760
    %1305 = vmatpush1.msra.mxu0 %v1304
    %1306 = vmatprep.subr.mxu0 0.0
    %v1307 = vand.u32 %v33, 4294901760
    %v1308 = vsub.f32 %v33, %v1307
    %v1309 = vand.u32 %v1308, 4294901760
    %v1310 = vsub.f32 %v1308, %v1309
    %v1311 = vand.u32 %v1310, 4294901760
    %1312 = vmatpush1.msra.mxu0 %v1311
    %1313 = vmatprep.subr.mxu0 0.0
    %v1314 = vand.u32 %v34, 4294901760
    %v1315 = vsub.f32 %v34, %v1314
    %v1316 = vand.u32 %v1315, 4294901760
    %v1317 = vsub.f32 %v1315, %v1316
    %v1318 = vand.u32 %v1317, 4294901760
    %1319 = vmatpush1.msra.mxu0 %v1318
    %1320 = vmatprep.subr.mxu0 0.0
    %v1321 = vand.u32 %v35, 4294901760
    %v1322 = vsub.f32 %v35, %v1321
    %v1323 = vand.u32 %v1322, 4294901760
    %v1324 = vsub.f32 %v1322, %v1323
    %v1325 = vand.u32 %v1324, 4294901760
    %1326 = vmatpush1.msra.mxu0 %v1325
    %1327 = vmatprep.subr.mxu0 0.0
    %v1328 = vand.u32 %v36, 4294901760
    %v1329 = vsub.f32 %v36, %v1328
    %v1330 = vand.u32 %v1329, 4294901760
    %v1331 = vsub.f32 %v1329, %v1330
    %v1332 = vand.u32 %v1331, 4294901760
    %1333 = vmatpush1.msra.mxu0 %v1332
    %1334 = vmatprep.subr.mxu0 0.0
    %v1335 = vand.u32 %v37, 4294901760
    %v1336 = vsub.f32 %v37, %v1335
    %v1337 = vand.u32 %v1336, 4294901760
    %v1338 = vsub.f32 %v1336, %v1337
    %v1339 = vand.u32 %v1338, 4294901760
    %1340 = vmatpush1.msra.mxu0 %v1339
    %1341 = vmatprep.subr.mxu0 0.0
    %1342 = vmatpush1.msra.mxu0 0.0
    %1343 = vmatprep.subr.mxu0 0.0
    %1344 = vmatpush1.msra.mxu0 0.0
    %1345 = vmatprep.subr.mxu0 0.0
    %1346 = vmatpush1.msra.mxu0 0.0
    %1347 = vmatprep.subr.mxu0 0.0
    %1348 = vmatpush1.msra.mxu0 0.0
    %1349 = vmatprep.subr.mxu0 0.0
    %1350 = vmatpush1.msra.mxu0 0.0
    %1351 = vmatprep.subr.mxu0 0.0
    %1352 = vmatpush1.msra.mxu0 0.0
    %1353 = vmatprep.subr.mxu0 0.0
    %1354 = vmatpush1.msra.mxu0 0.0
    %1355 = vmatprep.subr.mxu0 0.0
    %1356 = vmatpush1.msra.mxu0 0.0
    %1357 = vmatprep.subr.mxu0 0.0
    %1358 = vmatpush1.msra.mxu0 0.0
    %1359 = vmatprep.subr.mxu0 0.0
    %1360 = vmatpush1.msra.mxu0 0.0
    %1361 = vmatprep.subr.mxu0 0.0
    %1362 = vmatpush1.msra.mxu0 0.0
    %1363 = vmatprep.subr.mxu0 0.0
    %1364 = vmatpush1.msra.mxu0 0.0
    %1365 = vmatprep.subr.mxu0 0.0
    %1366 = vmatpush1.msra.mxu0 0.0
    %1367 = vmatprep.subr.mxu0 0.0
    %1368 = vmatpush1.msra.mxu0 0.0
    %1369 = vmatprep.subr.mxu0 0.0
    %1370 = vmatpush1.msra.mxu0 0.0
    %1371 = vmatprep.subr.mxu0 0.0
    %1372 = vmatpush1.msra.mxu0 0.0
    %1373 = vmatprep.mubr.f32.mxu0 0.0
    %v1374 = vand.u32 %v1137, 4294901760
    %1375 = vmatmul.mubr.f32.gmra.mrb[0].mxu0 %v1374
    %v1376 = vpop.f32.mrb[0].mxu0
    %v1377 = vadd.f32 %v1226, %v1376
    %v1378 = vpop.f32.mrb[0].mxu0
    %1379 = vdwg.mxu0
    %1380 = vmatprep.subr.mxu0 0.0
    %v1381 = vand.u32 %v22, 4294901760
    %v1382 = vsub.f32 %v22, %v1381
    %1383 = vmatpush1.msra.mxu0 %v1382
    %1384 = vmatprep.subr.mxu0 0.0
    %v1385 = vand.u32 %v23, 4294901760
    %v1386 = vsub.f32 %v23, %v1385
    %1387 = vmatpush1.msra.mxu0 %v1386
    %1388 = vmatprep.subr.mxu0 0.0
    %v1389 = vand.u32 %v24, 4294901760
    %v1390 = vsub.f32 %v24, %v1389
    %1391 = vmatpush1.msra.mxu0 %v1390
    %1392 = vmatprep.subr.mxu0 0.0
    %v1393 = vand.u32 %v25, 4294901760
    %v1394 = vsub.f32 %v25, %v1393
    %1395 = vmatpush1.msra.mxu0 %v1394
    %1396 = vmatprep.subr.mxu0 0.0
    %v1397 = vand.u32 %v26, 4294901760
    %v1398 = vsub.f32 %v26, %v1397
    %1399 = vmatpush1.msra.mxu0 %v1398
    %1400 = vmatprep.subr.mxu0 0.0
    %v1401 = vand.u32 %v27, 4294901760
    %v1402 = vsub.f32 %v27, %v1401
    %1403 = vmatpush1.msra.mxu0 %v1402
    %1404 = vmatprep.subr.mxu0 0.0
    %v1405 = vand.u32 %v28, 4294901760
    %v1406 = vsub.f32 %v28, %v1405
    %1407 = vmatpush1.msra.mxu0 %v1406
    %1408 = vmatprep.subr.mxu0 0.0
    %v1409 = vand.u32 %v29, 4294901760
    %v1410 = vsub.f32 %v29, %v1409
    %1411 = vmatpush1.msra.mxu0 %v1410
    %1412 = vmatprep.subr.mxu0 0.0
    %v1413 = vand.u32 %v30, 4294901760
    %v1414 = vsub.f32 %v30, %v1413
    %1415 = vmatpush1.msra.mxu0 %v1414
    %1416 = vmatprep.subr.mxu0 0.0
    %v1417 = vand.u32 %v31, 4294901760
    %v1418 = vsub.f32 %v31, %v1417
    %1419 = vmatpush1.msra.mxu0 %v1418
    %1420 = vmatprep.subr.mxu0 0.0
    %v1421 = vand.u32 %v32, 4294901760
    %v1422 = vsub.f32 %v32, %v1421
    %1423 = vmatpush1.msra.mxu0 %v1422
    %1424 = vmatprep.subr.mxu0 0.0
    %v1425 = vand.u32 %v33, 4294901760
    %v1426 = vsub.f32 %v33, %v1425
    %1427 = vmatpush1.msra.mxu0 %v1426
    %1428 = vmatprep.subr.mxu0 0.0
    %v1429 = vand.u32 %v34, 4294901760
    %v1430 = vsub.f32 %v34, %v1429
    %1431 = vmatpush1.msra.mxu0 %v1430
    %1432 = vmatprep.subr.mxu0 0.0
    %v1433 = vand.u32 %v35, 4294901760
    %v1434 = vsub.f32 %v35, %v1433
    %1435 = vmatpush1.msra.mxu0 %v1434
    %1436 = vmatprep.subr.mxu0 0.0
    %v1437 = vand.u32 %v36, 4294901760
    %v1438 = vsub.f32 %v36, %v1437
    %1439 = vmatpush1.msra.mxu0 %v1438
    %1440 = vmatprep.subr.mxu0 0.0
    %v1441 = vand.u32 %v37, 4294901760
    %v1442 = vsub.f32 %v37, %v1441
    %1443 = vmatpush1.msra.mxu0 %v1442
    %1444 = vmatprep.subr.mxu0 0.0
    %1445 = vmatpush1.msra.mxu0 0.0
    %1446 = vmatprep.subr.mxu0 0.0
    %1447 = vmatpush1.msra.mxu0 0.0
    %1448 = vmatprep.subr.mxu0 0.0
    %1449 = vmatpush1.msra.mxu0 0.0
    %1450 = vmatprep.subr.mxu0 0.0
    %1451 = vmatpush1.msra.mxu0 0.0
    %1452 = vmatprep.subr.mxu0 0.0
    %1453 = vmatpush1.msra.mxu0 0.0
    %1454 = vmatprep.subr.mxu0 0.0
    %1455 = vmatpush1.msra.mxu0 0.0
    %1456 = vmatprep.subr.mxu0 0.0
    %1457 = vmatpush1.msra.mxu0 0.0
    %1458 = vmatprep.subr.mxu0 0.0
    %1459 = vmatpush1.msra.mxu0 0.0
    %1460 = vmatprep.subr.mxu0 0.0
    %1461 = vmatpush1.msra.mxu0 0.0
    %1462 = vmatprep.subr.mxu0 0.0
    %1463 = vmatpush1.msra.mxu0 0.0
    %1464 = vmatprep.subr.mxu0 0.0
    %1465 = vmatpush1.msra.mxu0 0.0
    %1466 = vmatprep.subr.mxu0 0.0
    %1467 = vmatpush1.msra.mxu0 0.0
    %1468 = vmatprep.subr.mxu0 0.0
    %1469 = vmatpush1.msra.mxu0 0.0
    %1470 = vmatprep.subr.mxu0 0.0
    %1471 = vmatpush1.msra.mxu0 0.0
    %1472 = vmatprep.subr.mxu0 0.0
    %1473 = vmatpush1.msra.mxu0 0.0
    %1474 = vmatprep.subr.mxu0 0.0
    %1475 = vmatpush1.msra.mxu0 0.0
    %1476 = vmatprep.mubr.f32.mxu0 0.0
    %v1477 = vand.u32 %v1137, 4294901760
    %v1478 = vsub.f32 %v1137, %v1477
    %1479 = vmatmul.mubr.f32.gmra.mrb[0].mxu0 %v1478
    %v1480 = vpop.f32.mrb[0].mxu0
    %v1481 = vadd.f32 %v1377, %v1480
    %v1482 = vpop.f32.mrb[0].mxu0
    %1483 = vdwg.mxu0
    %1484 = vmatprep.subr.mxu0 0.0
    %v1485 = vand.u32 %v22, 4294901760
    %1486 = vmatpush1.msra.mxu0 %v1485
    %1487 = vmatprep.subr.mxu0 0.0
    %v1488 = vand.u32 %v23, 4294901760
    %1489 = vmatpush1.msra.mxu0 %v1488
    %1490 = vmatprep.subr.mxu0 0.0
    %v1491 = vand.u32 %v24, 4294901760
    %1492 = vmatpush1.msra.mxu0 %v1491
    %1493 = vmatprep.subr.mxu0 0.0
    %v1494 = vand.u32 %v25, 4294901760
    %1495 = vmatpush1.msra.mxu0 %v1494
    %1496 = vmatprep.subr.mxu0 0.0
    %v1497 = vand.u32 %v26, 4294901760
    %1498 = vmatpush1.msra.mxu0 %v1497
    %1499 = vmatprep.subr.mxu0 0.0
    %v1500 = vand.u32 %v27, 4294901760
    %1501 = vmatpush1.msra.mxu0 %v1500
    %1502 = vmatprep.subr.mxu0 0.0
    %v1503 = vand.u32 %v28, 4294901760
    %1504 = vmatpush1.msra.mxu0 %v1503
    %1505 = vmatprep.subr.mxu0 0.0
    %v1506 = vand.u32 %v29, 4294901760
    %1507 = vmatpush1.msra.mxu0 %v1506
    %1508 = vmatprep.subr.mxu0 0.0
    %v1509 = vand.u32 %v30, 4294901760
    %1510 = vmatpush1.msra.mxu0 %v1509
    %1511 = vmatprep.subr.mxu0 0.0
    %v1512 = vand.u32 %v31, 4294901760
    %1513 = vmatpush1.msra.mxu0 %v1512
    %1514 = vmatprep.subr.mxu0 0.0
    %v1515 = vand.u32 %v32, 4294901760
    %1516 = vmatpush1.msra.mxu0 %v1515
    %1517 = vmatprep.subr.mxu0 0.0
    %v1518 = vand.u32 %v33, 4294901760
    %1519 = vmatpush1.msra.mxu0 %v1518
    %1520 = vmatprep.subr.mxu0 0.0
    %v1521 = vand.u32 %v34, 4294901760
    %1522 = vmatpush1.msra.mxu0 %v1521
    %1523 = vmatprep.subr.mxu0 0.0
    %v1524 = vand.u32 %v35, 4294901760
    %1525 = vmatpush1.msra.mxu0 %v1524
    %1526 = vmatprep.subr.mxu0 0.0
    %v1527 = vand.u32 %v36, 4294901760
    %1528 = vmatpush1.msra.mxu0 %v1527
    %1529 = vmatprep.subr.mxu0 0.0
    %v1530 = vand.u32 %v37, 4294901760
    %1531 = vmatpush1.msra.mxu0 %v1530
    %1532 = vmatprep.subr.mxu0 0.0
    %1533 = vmatpush1.msra.mxu0 0.0
    %1534 = vmatprep.subr.mxu0 0.0
    %1535 = vmatpush1.msra.mxu0 0.0
    %1536 = vmatprep.subr.mxu0 0.0
    %1537 = vmatpush1.msra.mxu0 0.0
    %1538 = vmatprep.subr.mxu0 0.0
    %1539 = vmatpush1.msra.mxu0 0.0
    %1540 = vmatprep.subr.mxu0 0.0
    %1541 = vmatpush1.msra.mxu0 0.0
    %1542 = vmatprep.subr.mxu0 0.0
    %1543 = vmatpush1.msra.mxu0 0.0
    %1544 = vmatprep.subr.mxu0 0.0
    %1545 = vmatpush1.msra.mxu0 0.0
    %1546 = vmatprep.subr.mxu0 0.0
    %1547 = vmatpush1.msra.mxu0 0.0
    %1548 = vmatprep.subr.mxu0 0.0
    %1549 = vmatpush1.msra.mxu0 0.0
    %1550 = vmatprep.subr.mxu0 0.0
    %1551 = vmatpush1.msra.mxu0 0.0
    %1552 = vmatprep.subr.mxu0 0.0
    %1553 = vmatpush1.msra.mxu0 0.0
    %1554 = vmatprep.subr.mxu0 0.0
    %1555 = vmatpush1.msra.mxu0 0.0
    %1556 = vmatprep.subr.mxu0 0.0
    %1557 = vmatpush1.msra.mxu0 0.0
    %1558 = vmatprep.subr.mxu0 0.0
    %1559 = vmatpush1.msra.mxu0 0.0
    %1560 = vmatprep.subr.mxu0 0.0
    %1561 = vmatpush1.msra.mxu0 0.0
    %1562 = vmatprep.subr.mxu0 0.0
    %1563 = vmatpush1.msra.mxu0 0.0
    %1564 = vmatprep.mubr.f32.mxu0 0.0
    %v1565 = vand.u32 %v1137, 4294901760
    %v1566 = vsub.f32 %v1137, %v1565
    %v1567 = vand.u32 %v1566, 4294901760
    %1568 = vmatmul.mubr.f32.gmra.mrb[0].mxu0 %v1567
    %v1569 = vpop.f32.mrb[0].mxu0
    %v1570 = vadd.f32 %v1481, %v1569
    %v1571 = vpop.f32.mrb[0].mxu0
    %1572 = vdwg.mxu0
    %1573 = vmatprep.subr.mxu0 0.0
    %v1574 = vand.u32 %v22, 4294901760
    %v1575 = vsub.f32 %v22, %v1574
    %v1576 = vand.u32 %v1575, 4294901760
    %1577 = vmatpush1.msra.mxu0 %v1576
    %1578 = vmatprep.subr.mxu0 0.0
    %v1579 = vand.u32 %v23, 4294901760
    %v1580 = vsub.f32 %v23, %v1579
    %v1581 = vand.u32 %v1580, 4294901760
    %1582 = vmatpush1.msra.mxu0 %v1581
    %1583 = vmatprep.subr.mxu0 0.0
    %v1584 = vand.u32 %v24, 4294901760
    %v1585 = vsub.f32 %v24, %v1584
    %v1586 = vand.u32 %v1585, 4294901760
    %1587 = vmatpush1.msra.mxu0 %v1586
    %1588 = vmatprep.subr.mxu0 0.0
    %v1589 = vand.u32 %v25, 4294901760
    %v1590 = vsub.f32 %v25, %v1589
    %v1591 = vand.u32 %v1590, 4294901760
    %1592 = vmatpush1.msra.mxu0 %v1591
    %1593 = vmatprep.subr.mxu0 0.0
    %v1594 = vand.u32 %v26, 4294901760
    %v1595 = vsub.f32 %v26, %v1594
    %v1596 = vand.u32 %v1595, 4294901760
    %1597 = vmatpush1.msra.mxu0 %v1596
    %1598 = vmatprep.subr.mxu0 0.0
    %v1599 = vand.u32 %v27, 4294901760
    %v1600 = vsub.f32 %v27, %v1599
    %v1601 = vand.u32 %v1600, 4294901760
    %1602 = vmatpush1.msra.mxu0 %v1601
    %1603 = vmatprep.subr.mxu0 0.0
    %v1604 = vand.u32 %v28, 4294901760
    %v1605 = vsub.f32 %v28, %v1604
    %v1606 = vand.u32 %v1605, 4294901760
    %1607 = vmatpush1.msra.mxu0 %v1606
    %1608 = vmatprep.subr.mxu0 0.0
    %v1609 = vand.u32 %v29, 4294901760
    %v1610 = vsub.f32 %v29, %v1609
    %v1611 = vand.u32 %v1610, 4294901760
    %1612 = vmatpush1.msra.mxu0 %v1611
    %1613 = vmatprep.subr.mxu0 0.0
    %v1614 = vand.u32 %v30, 4294901760
    %v1615 = vsub.f32 %v30, %v1614
    %v1616 = vand.u32 %v1615, 4294901760
    %1617 = vmatpush1.msra.mxu0 %v1616
    %1618 = vmatprep.subr.mxu0 0.0
    %v1619 = vand.u32 %v31, 4294901760
    %v1620 = vsub.f32 %v31, %v1619
    %v1621 = vand.u32 %v1620, 4294901760
    %1622 = vmatpush1.msra.mxu0 %v1621
    %1623 = vmatprep.subr.mxu0 0.0
    %v1624 = vand.u32 %v32, 4294901760
    %v1625 = vsub.f32 %v32, %v1624
    %v1626 = vand.u32 %v1625, 4294901760
    %1627 = vmatpush1.msra.mxu0 %v1626
    %1628 = vmatprep.subr.mxu0 0.0
    %v1629 = vand.u32 %v33, 4294901760
    %v1630 = vsub.f32 %v33, %v1629
    %v1631 = vand.u32 %v1630, 4294901760
    %1632 = vmatpush1.msra.mxu0 %v1631
    %1633 = vmatprep.subr.mxu0 0.0
    %v1634 = vand.u32 %v34, 4294901760
    %v1635 = vsub.f32 %v34, %v1634
    %v1636 = vand.u32 %v1635, 4294901760
    %1637 = vmatpush1.msra.mxu0 %v1636
    %1638 = vmatprep.subr.mxu0 0.0
    %v1639 = vand.u32 %v35, 4294901760
    %v1640 = vsub.f32 %v35, %v1639
    %v1641 = vand.u32 %v1640, 4294901760
    %1642 = vmatpush1.msra.mxu0 %v1641
    %1643 = vmatprep.subr.mxu0 0.0
    %v1644 = vand.u32 %v36, 4294901760
    %v1645 = vsub.f32 %v36, %v1644
    %v1646 = vand.u32 %v1645, 4294901760
    %1647 = vmatpush1.msra.mxu0 %v1646
    %1648 = vmatprep.subr.mxu0 0.0
    %v1649 = vand.u32 %v37, 4294901760
    %v1650 = vsub.f32 %v37, %v1649
    %v1651 = vand.u32 %v1650, 4294901760
    %1652 = vmatpush1.msra.mxu0 %v1651
    %1653 = vmatprep.subr.mxu0 0.0
    %1654 = vmatpush1.msra.mxu0 0.0
    %1655 = vmatprep.subr.mxu0 0.0
    %1656 = vmatpush1.msra.mxu0 0.0
    %1657 = vmatprep.subr.mxu0 0.0
    %1658 = vmatpush1.msra.mxu0 0.0
    %1659 = vmatprep.subr.mxu0 0.0
    %1660 = vmatpush1.msra.mxu0 0.0
    %1661 = vmatprep.subr.mxu0 0.0
    %1662 = vmatpush1.msra.mxu0 0.0
    %1663 = vmatprep.subr.mxu0 0.0
    %1664 = vmatpush1.msra.mxu0 0.0
    %1665 = vmatprep.subr.mxu0 0.0
    %1666 = vmatpush1.msra.mxu0 0.0
    %1667 = vmatprep.subr.mxu0 0.0
    %1668 = vmatpush1.msra.mxu0 0.0
    %1669 = vmatprep.subr.mxu0 0.0
    %1670 = vmatpush1.msra.mxu0 0.0
    %1671 = vmatprep.subr.mxu0 0.0
    %1672 = vmatpush1.msra.mxu0 0.0
    %1673 = vmatprep.subr.mxu0 0.0
    %1674 = vmatpush1.msra.mxu0 0.0
    %1675 = vmatprep.subr.mxu0 0.0
    %1676 = vmatpush1.msra.mxu0 0.0
    %1677 = vmatprep.subr.mxu0 0.0
    %1678 = vmatpush1.msra.mxu0 0.0
    %1679 = vmatprep.subr.mxu0 0.0
    %1680 = vmatpush1.msra.mxu0 0.0
    %1681 = vmatprep.subr.mxu0 0.0
    %1682 = vmatpush1.msra.mxu0 0.0
    %1683 = vmatprep.subr.mxu0 0.0
    %1684 = vmatpush1.msra.mxu0 0.0
    %1685 = vmatprep.mubr.f32.mxu0 0.0
    %v1686 = vand.u32 %v1137, 4294901760
    %1687 = vmatmul.mubr.f32.gmra.mrb[0].mxu0 %v1686
    %v1688 = vpop.f32.mrb[0].mxu0
    %v1689 = vadd.f32 %v1570, %v1688
    %v1690 = vpop.f32.mrb[0].mxu0
    %1691 = vdwg.mxu0
    %1692 = vmatprep.subr.mxu0 0.0
    %v1693 = vand.u32 %v22, 4294901760
    %1694 = vmatpush1.msra.mxu0 %v1693
    %1695 = vmatprep.subr.mxu0 0.0
    %v1696 = vand.u32 %v23, 4294901760
    %1697 = vmatpush1.msra.mxu0 %v1696
    %1698 = vmatprep.subr.mxu0 0.0
    %v1699 = vand.u32 %v24, 4294901760
    %1700 = vmatpush1.msra.mxu0 %v1699
    %1701 = vmatprep.subr.mxu0 0.0
    %v1702 = vand.u32 %v25, 4294901760
    %1703 = vmatpush1.msra.mxu0 %v1702
    %1704 = vmatprep.subr.mxu0 0.0
    %v1705 = vand.u32 %v26, 4294901760
    %1706 = vmatpush1.msra.mxu0 %v1705
    %1707 = vmatprep.subr.mxu0 0.0
    %v1708 = vand.u32 %v27, 4294901760
    %1709 = vmatpush1.msra.mxu0 %v1708
    %1710 = vmatprep.subr.mxu0 0.0
    %v1711 = vand.u32 %v28, 4294901760
    %1712 = vmatpush1.msra.mxu0 %v1711
    %1713 = vmatprep.subr.mxu0 0.0
    %v1714 = vand.u32 %v29, 4294901760
    %1715 = vmatpush1.msra.mxu0 %v1714
    %1716 = vmatprep.subr.mxu0 0.0
    %v1717 = vand.u32 %v30, 4294901760
    %1718 = vmatpush1.msra.mxu0 %v1717
    %1719 = vmatprep.subr.mxu0 0.0
    %v1720 = vand.u32 %v31, 4294901760
    %1721 = vmatpush1.msra.mxu0 %v1720
    %1722 = vmatprep.subr.mxu0 0.0
    %v1723 = vand.u32 %v32, 4294901760
    %1724 = vmatpush1.msra.mxu0 %v1723
    %1725 = vmatprep.subr.mxu0 0.0
    %v1726 = vand.u32 %v33, 4294901760
    %1727 = vmatpush1.msra.mxu0 %v1726
    %1728 = vmatprep.subr.mxu0 0.0
    %v1729 = vand.u32 %v34, 4294901760
    %1730 = vmatpush1.msra.mxu0 %v1729
    %1731 = vmatprep.subr.mxu0 0.0
    %v1732 = vand.u32 %v35, 4294901760
    %1733 = vmatpush1.msra.mxu0 %v1732
    %1734 = vmatprep.subr.mxu0 0.0
    %v1735 = vand.u32 %v36, 4294901760
    %1736 = vmatpush1.msra.mxu0 %v1735
    %1737 = vmatprep.subr.mxu0 0.0
    %v1738 = vand.u32 %v37, 4294901760
    %1739 = vmatpush1.msra.mxu0 %v1738
    %1740 = vmatprep.subr.mxu0 0.0
    %1741 = vmatpush1.msra.mxu0 0.0
    %1742 = vmatprep.subr.mxu0 0.0
    %1743 = vmatpush1.msra.mxu0 0.0
    %1744 = vmatprep.subr.mxu0 0.0
    %1745 = vmatpush1.msra.mxu0 0.0
    %1746 = vmatprep.subr.mxu0 0.0
    %1747 = vmatpush1.msra.mxu0 0.0
    %1748 = vmatprep.subr.mxu0 0.0
    %1749 = vmatpush1.msra.mxu0 0.0
    %1750 = vmatprep.subr.mxu0 0.0
    %1751 = vmatpush1.msra.mxu0 0.0
    %1752 = vmatprep.subr.mxu0 0.0
    %1753 = vmatpush1.msra.mxu0 0.0
    %1754 = vmatprep.subr.mxu0 0.0
    %1755 = vmatpush1.msra.mxu0 0.0
    %1756 = vmatprep.subr.mxu0 0.0
    %1757 = vmatpush1.msra.mxu0 0.0
    %1758 = vmatprep.subr.mxu0 0.0
    %1759 = vmatpush1.msra.mxu0 0.0
    %1760 = vmatprep.subr.mxu0 0.0
    %1761 = vmatpush1.msra.mxu0 0.0
    %1762 = vmatprep.subr.mxu0 0.0
    %1763 = vmatpush1.msra.mxu0 0.0
    %1764 = vmatprep.subr.mxu0 0.0
    %1765 = vmatpush1.msra.mxu0 0.0
    %1766 = vmatprep.subr.mxu0 0.0
    %1767 = vmatpush1.msra.mxu0 0.0
    %1768 = vmatprep.subr.mxu0 0.0
    %1769 = vmatpush1.msra.mxu0 0.0
    %1770 = vmatprep.subr.mxu0 0.0
    %1771 = vmatpush1.msra.mxu0 0.0
    %1772 = vmatprep.mubr.f32.mxu0 0.0
    %v1773 = vand.u32 %v1137, 4294901760
    %1774 = vmatmul.mubr.f32.gmra.mrb[0].mxu0 %v1773
    %v1775 = vpop.f32.mrb[0].mxu0
    %v1776 = vadd.f32 %v1689, %v1775
    %v1777 = vpop.f32.mrb[0].mxu0
    %1778 = vdwg.mxu0
    %v1779 = vrcp.pop 31.0
    %v1780 = vmul.f32 %v1776, %v1779
    %v1781 = vrsqrt.pop %v1780
    %v1782 = vmul.f32 %v1780, %v1781
    %vm1783 = vcmp.eq.f32.partialorder %v1780, inf
    %v1784 = vsel %vm1783, %v1780, %v1782
    %vm1785 = vcmp.eq.f32.partialorder %v1780, 0.0
    %v1786 = vand.u32 %v1780, 2147483648
    %v1787 = vsel %vm1785, %v1786, %v1784
    %v1788 = vadd.f32 %v1787, 1e-06
    %v1789 = vrcp.pop %v1788
    %v1790 = vmul.f32 1.0, %v1789
    %v1792 = vsel %vm682, %v1790, 0
    %1794 = vmatprep.subr.mxu0 0.0
    %v1795 = vand.u32 %v688, 4294901760
    %1796 = vmatpush1.msra.mxu0 %v1795
    %1797 = vmatprep.subr.mxu0 0.0
    %1798 = vmatpush1.msra.mxu0 0.0
    %1799 = vmatprep.subr.mxu0 0.0
    %1800 = vmatpush1.msra.mxu0 0.0
    %1801 = vmatprep.subr.mxu0 0.0
    %1802 = vmatpush1.msra.mxu0 0.0
    %1803 = vmatprep.subr.mxu0 0.0
    %1804 = vmatpush1.msra.mxu0 0.0
    %1805 = vmatprep.subr.mxu0 0.0
    %1806 = vmatpush1.msra.mxu0 0.0
    %1807 = vmatprep.subr.mxu0 0.0
    %1808 = vmatpush1.msra.mxu0 0.0
    %1809 = vmatprep.subr.mxu0 0.0
    %1810 = vmatpush1.msra.mxu0 0.0
    %1811 = vmatprep.subr.mxu0 0.0
    %1812 = vmatpush1.msra.mxu0 0.0
    %1813 = vmatprep.subr.mxu0 0.0
    %1814 = vmatpush1.msra.mxu0 0.0
    %1815 = vmatprep.subr.mxu0 0.0
    %1816 = vmatpush1.msra.mxu0 0.0
    %1817 = vmatprep.subr.mxu0 0.0
    %1818 = vmatpush1.msra.mxu0 0.0
    %1819 = vmatprep.subr.mxu0 0.0
    %1820 = vmatpush1.msra.mxu0 0.0
    %1821 = vmatprep.subr.mxu0 0.0
    %1822 = vmatpush1.msra.mxu0 0.0
    %1823 = vmatprep.subr.mxu0 0.0
    %1824 = vmatpush1.msra.mxu0 0.0
    %1825 = vmatprep.subr.mxu0 0.0
    %1826 = vmatpush1.msra.mxu0 0.0
    %1827 = vmatprep.subr.mxu0 0.0
    %1828 = vmatpush1.msra.mxu0 0.0
    %1829 = vmatprep.subr.mxu0 0.0
    %1830 = vmatpush1.msra.mxu0 0.0
    %1831 = vmatprep.subr.mxu0 0.0
    %1832 = vmatpush1.msra.mxu0 0.0
    %1833 = vmatprep.subr.mxu0 0.0
    %1834 = vmatpush1.msra.mxu0 0.0
    %1835 = vmatprep.subr.mxu0 0.0
    %1836 = vmatpush1.msra.mxu0 0.0
    %1837 = vmatprep.subr.mxu0 0.0
    %1838 = vmatpush1.msra.mxu0 0.0
    %1839 = vmatprep.subr.mxu0 0.0
    %1840 = vmatpush1.msra.mxu0 0.0
    %1841 = vmatprep.subr.mxu0 0.0
    %1842 = vmatpush1.msra.mxu0 0.0
    %1843 = vmatprep.subr.mxu0 0.0
    %1844 = vmatpush1.msra.mxu0 0.0
    %1845 = vmatprep.subr.mxu0 0.0
    %1846 = vmatpush1.msra.mxu0 0.0
    %1847 = vmatprep.subr.mxu0 0.0
    %1848 = vmatpush1.msra.mxu0 0.0
    %1849 = vmatprep.subr.mxu0 0.0
    %1850 = vmatpush1.msra.mxu0 0.0
    %1851 = vmatprep.subr.mxu0 0.0
    %1852 = vmatpush1.msra.mxu0 0.0
    %1853 = vmatprep.subr.mxu0 0.0
    %1854 = vmatpush1.msra.mxu0 0.0
    %1855 = vmatprep.subr.mxu0 0.0
    %1856 = vmatpush1.msra.mxu0 0.0
    %1857 = vmatprep.subr.mxu0 0.0
    %1858 = vmatpush1.msra.mxu0 0.0
    %1859 = vmatprep.mubr.f32.mxu0 0.0
    %v1860 = vand.u32 %v1792, 4294901760
    %v1861 = vsub.f32 %v1792, %v1860
    %v1862 = vand.u32 %v1861, 4294901760
    %v1863 = vsub.f32 %v1861, %v1862
    %v1864 = vand.u32 %v1863, 4294901760
    %1865 = vmatmul.mubr.f32.gmra.mrb[0].mxu0 %v1864
    %v1866 = vpop.f32.mrb[0].mxu0
    %v1867 = vadd.f32 0.0, %v1866
    %v1868 = vpop.f32.mrb[0].mxu0
    %1869 = vdwg.mxu0
    %1870 = vmatprep.subr.mxu0 0.0
    %v1871 = vand.u32 %v688, 4294901760
    %v1872 = vsub.f32 %v688, %v1871
    %v1873 = vand.u32 %v1872, 4294901760
    %v1874 = vsub.f32 %v1872, %v1873
    %v1875 = vand.u32 %v1874, 4294901760
    %1876 = vmatpush1.msra.mxu0 %v1875
    %1877 = vmatprep.subr.mxu0 0.0
    %1878 = vmatpush1.msra.mxu0 0.0
    %1879 = vmatprep.subr.mxu0 0.0
    %1880 = vmatpush1.msra.mxu0 0.0
    %1881 = vmatprep.subr.mxu0 0.0
    %1882 = vmatpush1.msra.mxu0 0.0
    %1883 = vmatprep.subr.mxu0 0.0
    %1884 = vmatpush1.msra.mxu0 0.0
    %1885 = vmatprep.subr.mxu0 0.0
    %1886 = vmatpush1.msra.mxu0 0.0
    %1887 = vmatprep.subr.mxu0 0.0
    %1888 = vmatpush1.msra.mxu0 0.0
    %1889 = vmatprep.subr.mxu0 0.0
    %1890 = vmatpush1.msra.mxu0 0.0
    %1891 = vmatprep.subr.mxu0 0.0
    %1892 = vmatpush1.msra.mxu0 0.0
    %1893 = vmatprep.subr.mxu0 0.0
    %1894 = vmatpush1.msra.mxu0 0.0
    %1895 = vmatprep.subr.mxu0 0.0
    %1896 = vmatpush1.msra.mxu0 0.0
    %1897 = vmatprep.subr.mxu0 0.0
    %1898 = vmatpush1.msra.mxu0 0.0
    %1899 = vmatprep.subr.mxu0 0.0
    %1900 = vmatpush1.msra.mxu0 0.0
    %1901 = vmatprep.subr.mxu0 0.0
    %1902 = vmatpush1.msra.mxu0 0.0
    %1903 = vmatprep.subr.mxu0 0.0
    %1904 = vmatpush1.msra.mxu0 0.0
    %1905 = vmatprep.subr.mxu0 0.0
    %1906 = vmatpush1.msra.mxu0 0.0
    %1907 = vmatprep.subr.mxu0 0.0
    %1908 = vmatpush1.msra.mxu0 0.0
    %1909 = vmatprep.subr.mxu0 0.0
    %1910 = vmatpush1.msra.mxu0 0.0
    %1911 = vmatprep.subr.mxu0 0.0
    %1912 = vmatpush1.msra.mxu0 0.0
    %1913 = vmatprep.subr.mxu0 0.0
    %1914 = vmatpush1.msra.mxu0 0.0
    %1915 = vmatprep.subr.mxu0 0.0
    %1916 = vmatpush1.msra.mxu0 0.0
    %1917 = vmatprep.subr.mxu0 0.0
    %1918 = vmatpush1.msra.mxu0 0.0
    %1919 = vmatprep.subr.mxu0 0.0
    %1920 = vmatpush1.msra.mxu0 0.0
    %1921 = vmatprep.subr.mxu0 0.0
    %1922 = vmatpush1.msra.mxu0 0.0
    %1923 = vmatprep.subr.mxu0 0.0
    %1924 = vmatpush1.msra.mxu0 0.0
    %1925 = vmatprep.subr.mxu0 0.0
    %1926 = vmatpush1.msra.mxu0 0.0
    %1927 = vmatprep.subr.mxu0 0.0
    %1928 = vmatpush1.msra.mxu0 0.0
    %1929 = vmatprep.subr.mxu0 0.0
    %1930 = vmatpush1.msra.mxu0 0.0
    %1931 = vmatprep.subr.mxu0 0.0
    %1932 = vmatpush1.msra.mxu0 0.0
    %1933 = vmatprep.subr.mxu0 0.0
    %1934 = vmatpush1.msra.mxu0 0.0
    %1935 = vmatprep.subr.mxu0 0.0
    %1936 = vmatpush1.msra.mxu0 0.0
    %1937 = vmatprep.subr.mxu0 0.0
    %1938 = vmatpush1.msra.mxu0 0.0
    %1939 = vmatprep.mubr.f32.mxu0 0.0
    %v1940 = vand.u32 %v1792, 4294901760
    %1941 = vmatmul.mubr.f32.gmra.mrb[0].mxu0 %v1940
    %v1942 = vpop.f32.mrb[0].mxu0
    %v1943 = vadd.f32 %v1867, %v1942
    %v1944 = vpop.f32.mrb[0].mxu0
    %1945 = vdwg.mxu0
    %1946 = vmatprep.subr.mxu0 0.0
    %v1947 = vand.u32 %v688, 4294901760
    %v1948 = vsub.f32 %v688, %v1947
    %1949 = vmatpush1.msra.mxu0 %v1948
    %1950 = vmatprep.subr.mxu0 0.0
    %1951 = vmatpush1.msra.mxu0 0.0
    %1952 = vmatprep.subr.mxu0 0.0
    %1953 = vmatpush1.msra.mxu0 0.0
    %1954 = vmatprep.subr.mxu0 0.0
    %1955 = vmatpush1.msra.mxu0 0.0
    %1956 = vmatprep.subr.mxu0 0.0
    %1957 = vmatpush1.msra.mxu0 0.0
    %1958 = vmatprep.subr.mxu0 0.0
    %1959 = vmatpush1.msra.mxu0 0.0
    %1960 = vmatprep.subr.mxu0 0.0
    %1961 = vmatpush1.msra.mxu0 0.0
    %1962 = vmatprep.subr.mxu0 0.0
    %1963 = vmatpush1.msra.mxu0 0.0
    %1964 = vmatprep.subr.mxu0 0.0
    %1965 = vmatpush1.msra.mxu0 0.0
    %1966 = vmatprep.subr.mxu0 0.0
    %1967 = vmatpush1.msra.mxu0 0.0
    %1968 = vmatprep.subr.mxu0 0.0
    %1969 = vmatpush1.msra.mxu0 0.0
    %1970 = vmatprep.subr.mxu0 0.0
    %1971 = vmatpush1.msra.mxu0 0.0
    %1972 = vmatprep.subr.mxu0 0.0
    %1973 = vmatpush1.msra.mxu0 0.0
    %1974 = vmatprep.subr.mxu0 0.0
    %1975 = vmatpush1.msra.mxu0 0.0
    %1976 = vmatprep.subr.mxu0 0.0
    %1977 = vmatpush1.msra.mxu0 0.0
    %1978 = vmatprep.subr.mxu0 0.0
    %1979 = vmatpush1.msra.mxu0 0.0
    %1980 = vmatprep.subr.mxu0 0.0
    %1981 = vmatpush1.msra.mxu0 0.0
    %1982 = vmatprep.subr.mxu0 0.0
    %1983 = vmatpush1.msra.mxu0 0.0
    %1984 = vmatprep.subr.mxu0 0.0
    %1985 = vmatpush1.msra.mxu0 0.0
    %1986 = vmatprep.subr.mxu0 0.0
    %1987 = vmatpush1.msra.mxu0 0.0
    %1988 = vmatprep.subr.mxu0 0.0
    %1989 = vmatpush1.msra.mxu0 0.0
    %1990 = vmatprep.subr.mxu0 0.0
    %1991 = vmatpush1.msra.mxu0 0.0
    %1992 = vmatprep.subr.mxu0 0.0
    %1993 = vmatpush1.msra.mxu0 0.0
    %1994 = vmatprep.subr.mxu0 0.0
    %1995 = vmatpush1.msra.mxu0 0.0
    %1996 = vmatprep.subr.mxu0 0.0
    %1997 = vmatpush1.msra.mxu0 0.0
    %1998 = vmatprep.subr.mxu0 0.0
    %1999 = vmatpush1.msra.mxu0 0.0
    %2000 = vmatprep.subr.mxu0 0.0
    %2001 = vmatpush1.msra.mxu0 0.0
    %2002 = vmatprep.subr.mxu0 0.0
    %2003 = vmatpush1.msra.mxu0 0.0
    %2004 = vmatprep.subr.mxu0 0.0
    %2005 = vmatpush1.msra.mxu0 0.0
    %2006 = vmatprep.subr.mxu0 0.0
    %2007 = vmatpush1.msra.mxu0 0.0
    %2008 = vmatprep.subr.mxu0 0.0
    %2009 = vmatpush1.msra.mxu0 0.0
    %2010 = vmatprep.subr.mxu0 0.0
    %2011 = vmatpush1.msra.mxu0 0.0
    %2012 = vmatprep.mubr.f32.mxu0 0.0
    %v2013 = vand.u32 %v1792, 4294901760
    %v2014 = vsub.f32 %v1792, %v2013
    %2015 = vmatmul.mubr.f32.gmra.mrb[0].mxu0 %v2014
    %v2016 = vpop.f32.mrb[0].mxu0
    %v2017 = vadd.f32 %v1943, %v2016
    %v2018 = vpop.f32.mrb[0].mxu0
    %2019 = vdwg.mxu0
    %2020 = vmatprep.subr.mxu0 0.0
    %v2021 = vand.u32 %v688, 4294901760
    %2022 = vmatpush1.msra.mxu0 %v2021
    %2023 = vmatprep.subr.mxu0 0.0
    %2024 = vmatpush1.msra.mxu0 0.0
    %2025 = vmatprep.subr.mxu0 0.0
    %2026 = vmatpush1.msra.mxu0 0.0
    %2027 = vmatprep.subr.mxu0 0.0
    %2028 = vmatpush1.msra.mxu0 0.0
    %2029 = vmatprep.subr.mxu0 0.0
    %2030 = vmatpush1.msra.mxu0 0.0
    %2031 = vmatprep.subr.mxu0 0.0
    %2032 = vmatpush1.msra.mxu0 0.0
    %2033 = vmatprep.subr.mxu0 0.0
    %2034 = vmatpush1.msra.mxu0 0.0
    %2035 = vmatprep.subr.mxu0 0.0
    %2036 = vmatpush1.msra.mxu0 0.0
    %2037 = vmatprep.subr.mxu0 0.0
    %2038 = vmatpush1.msra.mxu0 0.0
    %2039 = vmatprep.subr.mxu0 0.0
    %2040 = vmatpush1.msra.mxu0 0.0
    %2041 = vmatprep.subr.mxu0 0.0
    %2042 = vmatpush1.msra.mxu0 0.0
    %2043 = vmatprep.subr.mxu0 0.0
    %2044 = vmatpush1.msra.mxu0 0.0
    %2045 = vmatprep.subr.mxu0 0.0
    %2046 = vmatpush1.msra.mxu0 0.0
    %2047 = vmatprep.subr.mxu0 0.0
    %2048 = vmatpush1.msra.mxu0 0.0
    %2049 = vmatprep.subr.mxu0 0.0
    %2050 = vmatpush1.msra.mxu0 0.0
    %2051 = vmatprep.subr.mxu0 0.0
    %2052 = vmatpush1.msra.mxu0 0.0
    %2053 = vmatprep.subr.mxu0 0.0
    %2054 = vmatpush1.msra.mxu0 0.0
    %2055 = vmatprep.subr.mxu0 0.0
    %2056 = vmatpush1.msra.mxu0 0.0
    %2057 = vmatprep.subr.mxu0 0.0
    %2058 = vmatpush1.msra.mxu0 0.0
    %2059 = vmatprep.subr.mxu0 0.0
    %2060 = vmatpush1.msra.mxu0 0.0
    %2061 = vmatprep.subr.mxu0 0.0
    %2062 = vmatpush1.msra.mxu0 0.0
    %2063 = vmatprep.subr.mxu0 0.0
    %2064 = vmatpush1.msra.mxu0 0.0
    %2065 = vmatprep.subr.mxu0 0.0
    %2066 = vmatpush1.msra.mxu0 0.0
    %2067 = vmatprep.subr.mxu0 0.0
    %2068 = vmatpush1.msra.mxu0 0.0
    %2069 = vmatprep.subr.mxu0 0.0
    %2070 = vmatpush1.msra.mxu0 0.0
    %2071 = vmatprep.subr.mxu0 0.0
    %2072 = vmatpush1.msra.mxu0 0.0
    %2073 = vmatprep.subr.mxu0 0.0
    %2074 = vmatpush1.msra.mxu0 0.0
    %2075 = vmatprep.subr.mxu0 0.0
    %2076 = vmatpush1.msra.mxu0 0.0
    %2077 = vmatprep.subr.mxu0 0.0
    %2078 = vmatpush1.msra.mxu0 0.0
    %2079 = vmatprep.subr.mxu0 0.0
    %2080 = vmatpush1.msra.mxu0 0.0
    %2081 = vmatprep.subr.mxu0 0.0
    %2082 = vmatpush1.msra.mxu0 0.0
    %2083 = vmatprep.subr.mxu0 0.0
    %2084 = vmatpush1.msra.mxu0 0.0
    %2085 = vmatprep.mubr.f32.mxu0 0.0
    %v2086 = vand.u32 %v1792, 4294901760
    %v2087 = vsub.f32 %v1792, %v2086
    %v2088 = vand.u32 %v2087, 4294901760
    %2089 = vmatmul.mubr.f32.gmra.mrb[0].mxu0 %v2088
    %v2090 = vpop.f32.mrb[0].mxu0
    %v2091 = vadd.f32 %v2017, %v2090
    %v2092 = vpop.f32.mrb[0].mxu0
    %2093 = vdwg.mxu0
    %2094 = vmatprep.subr.mxu0 0.0
    %v2095 = vand.u32 %v688, 4294901760
    %v2096 = vsub.f32 %v688, %v2095
    %v2097 = vand.u32 %v2096, 4294901760
    %2098 = vmatpush1.msra.mxu0 %v2097
    %2099 = vmatprep.subr.mxu0 0.0
    %2100 = vmatpush1.msra.mxu0 0.0
    %2101 = vmatprep.subr.mxu0 0.0
    %2102 = vmatpush1.msra.mxu0 0.0
    %2103 = vmatprep.subr.mxu0 0.0
    %2104 = vmatpush1.msra.mxu0 0.0
    %2105 = vmatprep.subr.mxu0 0.0
    %2106 = vmatpush1.msra.mxu0 0.0
    %2107 = vmatprep.subr.mxu0 0.0
    %2108 = vmatpush1.msra.mxu0 0.0
    %2109 = vmatprep.subr.mxu0 0.0
    %2110 = vmatpush1.msra.mxu0 0.0
    %2111 = vmatprep.subr.mxu0 0.0
    %2112 = vmatpush1.msra.mxu0 0.0
    %2113 = vmatprep.subr.mxu0 0.0
    %2114 = vmatpush1.msra.mxu0 0.0
    %2115 = vmatprep.subr.mxu0 0.0
    %2116 = vmatpush1.msra.mxu0 0.0
    %2117 = vmatprep.subr.mxu0 0.0
    %2118 = vmatpush1.msra.mxu0 0.0
    %2119 = vmatprep.subr.mxu0 0.0
    %2120 = vmatpush1.msra.mxu0 0.0
    %2121 = vmatprep.subr.mxu0 0.0
    %2122 = vmatpush1.msra.mxu0 0.0
    %2123 = vmatprep.subr.mxu0 0.0
    %2124 = vmatpush1.msra.mxu0 0.0
    %2125 = vmatprep.subr.mxu0 0.0
    %2126 = vmatpush1.msra.mxu0 0.0
    %2127 = vmatprep.subr.mxu0 0.0
    %2128 = vmatpush1.msra.mxu0 0.0
    %2129 = vmatprep.subr.mxu0 0.0
    %2130 = vmatpush1.msra.mxu0 0.0
    %2131 = vmatprep.subr.mxu0 0.0
    %2132 = vmatpush1.msra.mxu0 0.0
    %2133 = vmatprep.subr.mxu0 0.0
    %2134 = vmatpush1.msra.mxu0 0.0
    %2135 = vmatprep.subr.mxu0 0.0
    %2136 = vmatpush1.msra.mxu0 0.0
    %2137 = vmatprep.subr.mxu0 0.0
    %2138 = vmatpush1.msra.mxu0 0.0
    %2139 = vmatprep.subr.mxu0 0.0
    %2140 = vmatpush1.msra.mxu0 0.0
    %2141 = vmatprep.subr.mxu0 0.0
    %2142 = vmatpush1.msra.mxu0 0.0
    %2143 = vmatprep.subr.mxu0 0.0
    %2144 = vmatpush1.msra.mxu0 0.0
    %2145 = vmatprep.subr.mxu0 0.0
    %2146 = vmatpush1.msra.mxu0 0.0
    %2147 = vmatprep.subr.mxu0 0.0
    %2148 = vmatpush1.msra.mxu0 0.0
    %2149 = vmatprep.subr.mxu0 0.0
    %2150 = vmatpush1.msra.mxu0 0.0
    %2151 = vmatprep.subr.mxu0 0.0
    %2152 = vmatpush1.msra.mxu0 0.0
    %2153 = vmatprep.subr.mxu0 0.0
    %2154 = vmatpush1.msra.mxu0 0.0
    %2155 = vmatprep.subr.mxu0 0.0
    %2156 = vmatpush1.msra.mxu0 0.0
    %2157 = vmatprep.subr.mxu0 0.0
    %2158 = vmatpush1.msra.mxu0 0.0
    %2159 = vmatprep.subr.mxu0 0.0
    %2160 = vmatpush1.msra.mxu0 0.0
    %2161 = vmatprep.mubr.f32.mxu0 0.0
    %v2162 = vand.u32 %v1792, 4294901760
    %2163 = vmatmul.mubr.f32.gmra.mrb[0].mxu0 %v2162
    %v2164 = vpop.f32.mrb[0].mxu0
    %v2165 = vadd.f32 %v2091, %v2164
    %v2166 = vpop.f32.mrb[0].mxu0
    %2167 = vdwg.mxu0
    %2168 = vmatprep.subr.mxu0 0.0
    %v2169 = vand.u32 %v688, 4294901760
    %2170 = vmatpush1.msra.mxu0 %v2169
    %2171 = vmatprep.subr.mxu0 0.0
    %2172 = vmatpush1.msra.mxu0 0.0
    %2173 = vmatprep.subr.mxu0 0.0
    %2174 = vmatpush1.msra.mxu0 0.0
    %2175 = vmatprep.subr.mxu0 0.0
    %2176 = vmatpush1.msra.mxu0 0.0
    %2177 = vmatprep.subr.mxu0 0.0
    %2178 = vmatpush1.msra.mxu0 0.0
    %2179 = vmatprep.subr.mxu0 0.0
    %2180 = vmatpush1.msra.mxu0 0.0
    %2181 = vmatprep.subr.mxu0 0.0
    %2182 = vmatpush1.msra.mxu0 0.0
    %2183 = vmatprep.subr.mxu0 0.0
    %2184 = vmatpush1.msra.mxu0 0.0
    %2185 = vmatprep.subr.mxu0 0.0
    %2186 = vmatpush1.msra.mxu0 0.0
    %2187 = vmatprep.subr.mxu0 0.0
    %2188 = vmatpush1.msra.mxu0 0.0
    %2189 = vmatprep.subr.mxu0 0.0
    %2190 = vmatpush1.msra.mxu0 0.0
    %2191 = vmatprep.subr.mxu0 0.0
    %2192 = vmatpush1.msra.mxu0 0.0
    %2193 = vmatprep.subr.mxu0 0.0
    %2194 = vmatpush1.msra.mxu0 0.0
    %2195 = vmatprep.subr.mxu0 0.0
    %2196 = vmatpush1.msra.mxu0 0.0
    %2197 = vmatprep.subr.mxu0 0.0
    %2198 = vmatpush1.msra.mxu0 0.0
    %2199 = vmatprep.subr.mxu0 0.0
    %2200 = vmatpush1.msra.mxu0 0.0
    %2201 = vmatprep.subr.mxu0 0.0
    %2202 = vmatpush1.msra.mxu0 0.0
    %2203 = vmatprep.subr.mxu0 0.0
    %2204 = vmatpush1.msra.mxu0 0.0
    %2205 = vmatprep.subr.mxu0 0.0
    %2206 = vmatpush1.msra.mxu0 0.0
    %2207 = vmatprep.subr.mxu0 0.0
    %2208 = vmatpush1.msra.mxu0 0.0
    %2209 = vmatprep.subr.mxu0 0.0
    %2210 = vmatpush1.msra.mxu0 0.0
    %2211 = vmatprep.subr.mxu0 0.0
    %2212 = vmatpush1.msra.mxu0 0.0
    %2213 = vmatprep.subr.mxu0 0.0
    %2214 = vmatpush1.msra.mxu0 0.0
    %2215 = vmatprep.subr.mxu0 0.0
    %2216 = vmatpush1.msra.mxu0 0.0
    %2217 = vmatprep.subr.mxu0 0.0
    %2218 = vmatpush1.msra.mxu0 0.0
    %2219 = vmatprep.subr.mxu0 0.0
    %2220 = vmatpush1.msra.mxu0 0.0
    %2221 = vmatprep.subr.mxu0 0.0
    %2222 = vmatpush1.msra.mxu0 0.0
    %2223 = vmatprep.subr.mxu0 0.0
    %2224 = vmatpush1.msra.mxu0 0.0
    %2225 = vmatprep.subr.mxu0 0.0
    %2226 = vmatpush1.msra.mxu0 0.0
    %2227 = vmatprep.subr.mxu0 0.0
    %2228 = vmatpush1.msra.mxu0 0.0
    %2229 = vmatprep.subr.mxu0 0.0
    %2230 = vmatpush1.msra.mxu0 0.0
    %2231 = vmatprep.subr.mxu0 0.0
    %2232 = vmatpush1.msra.mxu0 0.0
    %2233 = vmatprep.mubr.f32.mxu0 0.0
    %v2234 = vand.u32 %v1792, 4294901760
    %2235 = vmatmul.mubr.f32.gmra.mrb[0].mxu0 %v2234
    %v2236 = vpop.f32.mrb[0].mxu0
    %v2237 = vadd.f32 %v2165, %v2236
    %v2238 = vpop.f32.mrb[0].mxu0
    %2239 = vdwg.mxu0
    %v2240 = vld [vmem:[%s1] sm:$0x1]
    %v2241 = vld [vmem:[%s2] sm:$0x1]
    %v2242 = vmul.f32 %v1136, %v2237
    %v2244 = vlaneseq
    %v2245 = vshrl.u32 %v2244, 7
    %v2246 = vsub.s32 0, %v2245
    %v2247 = vrot.slane %v2240, %v2246
    %v2249 = vmul.f32 %v2242, %v2247
    %v2251 = vlaneseq
    %v2252 = vshrl.u32 %v2251, 7
    %v2253 = vsub.s32 0, %v2252
    %v2254 = vrot.slane %v2241, %v2253
    %v2256 = vadd.f32 %v2249, %v2254
    %2257 = vst [vmem:[#allocation2] sm:$0xf] %v2256
    // Predicated region
    $region22: #{tpu_custom_call.1} parent=1 // pred_check
      _
    $region23: #{tpu_custom_call.1} parent=1 // pred_check_branch
      %2259 = sbr.rel (0) target = $region25
    $region24: #{tpu_custom_call.1} parent=1 // pred_region
      %s2261 = ssub.s32 64, 64
      %2262 = vsyncadd [#allocation3], %s2261
      %s2264 = sshll.u32 [#allocation2], 4
      %s2265 = int_to_ptr.vmem [resolvable:$true] %s2264
      %2267 = dma.vmem_to_hbm [thread:$0]  %s2265, 64, %s5, [#allocation3]
    $region25: #{tpu_custom_call.1} parent=1 // pred_fallthru
      _
    // Predicated region
    $region26: #{tpu_custom_call.1} parent=1 // pred_check
      _
    $region27: #{tpu_custom_call.1} parent=1 // pred_check_branch
      %2269 = sbr.rel (0) target = $region29
    $region28: #{tpu_custom_call.1} parent=1 // pred_region
      %2270 = dma.done [#allocation3], 64
    $region29: #{tpu_custom_call.1} parent=1 // pred_fallthru
      _
    %2271 = vsyncpa [#allocation3], 1

</llo_original>
